<compile_context>
chip_gen: v5e
topology: v5e:2x2
jax: 0.10.0
libtpu: 0.0.40
codegen_flags: <defaults>
</compile_context>

<pallas_src>
import functools
import math

import jax
import jax.numpy as jnp
import numpy as np
from jax.experimental import pallas as pl
from jax.experimental.pallas import tpu as pltpu

LN_EPS = 1e-5          # torch.nn.LayerNorm default
LEAKY_SLOPE = 0.01     # torch.nn.LeakyReLU default


def _leaky(x):
    return jnp.where(x >= 0, x, LEAKY_SLOPE * x)


# --------------------------------------------------------------------------
# Kernel 1: both edge DenseNets ([4,32,64,1] x2, independent weights) fused
#           via block-diagonal stacking; lane-dense (2, M) output.
# --------------------------------------------------------------------------
def _edge_mlp_kernel(e_ref, w1_ref, b1_ref, w2_ref, b2_ref, w3t_ref, b3_ref, o_ref):
    x = e_ref[...]                                                        # (tile_m, 4)
    h = _leaky(jnp.dot(x, w1_ref[...], preferred_element_type=jnp.float32) + b1_ref[...])
    h = _leaky(jnp.dot(h, w2_ref[...], preferred_element_type=jnp.float32) + b2_ref[...])
    # w3t is (2, 128) (transposed, block-diagonal).  Contract the 128-dim of both
    # operands (A @ B^T pattern) so the result is (2, tile_m): lane-dense store.
    y = jax.lax.dot_general(w3t_ref[...], h, (((1,), (1,)), ((), ())),
                            preferred_element_type=jnp.float32) + b3_ref[...]
    o_ref[...] = y                                                        # (2, tile_m)


def _block_diag(a, b):
    top = jnp.concatenate([a, jnp.zeros((a.shape[0], b.shape[1]), a.dtype)], axis=1)
    bot = jnp.concatenate([jnp.zeros((b.shape[0], a.shape[1]), b.dtype), b], axis=1)
    return jnp.concatenate([top, bot], axis=0)


def edge_mlp_fused(edge, params_a, params_b):
    """Run both DenseNets on the same edge tensor in one kernel.

    Returns (2, M): row 0 = kernel(edge), row 1 = kernelf(edge)."""
    w1a, b1a, w2a, b2a, w3a, b3a = params_a
    w1b, b1b, w2b, b2b, w3b, b3b = params_b

    # layer 1 shares the input -> plain concat; layers 2/3 are block-diagonal
    w1 = jnp.concatenate([w1a, w1b], axis=1)                  # (4, 64)
    b1 = jnp.concatenate([b1a, b1b])[None, :]                 # (1, 64)
    w2 = _block_diag(w2a, w2b)                                # (64, 128)
    b2 = jnp.concatenate([b2a, b2b])[None, :]                 # (1, 128)
    w3t = _block_diag(w3a, w3b).T                             # (2, 128)
    b3 = jnp.concatenate([b3a, b3b])[:, None]                 # (2, 1)

    M, E = edge.shape
    # Tile over edge rows so the kernel stays inside VMEM at realistic ntoken
    # (v7x has only 64 MiB).  Demo sizes take the single-tile path.
    tile_m = M if M <= 4096 else 4096
    grid = (pl.cdiv(M, tile_m),)

    def _wspec(arr):
        return pl.BlockSpec(arr.shape, lambda i: (0, 0))

    return pl.pallas_call(
        _edge_mlp_kernel,
        out_shape=jax.ShapeDtypeStruct((2, M), jnp.float32),
        grid=grid,
        in_specs=[
            pl.BlockSpec((tile_m, E), lambda i: (i, 0)),
            _wspec(w1), _wspec(b1), _wspec(w2), _wspec(b2), _wspec(w3t), _wspec(b3),
        ],
        out_specs=pl.BlockSpec((2, tile_m), lambda i: (0, i)),
        compiler_params=pltpu.CompilerParams(dimension_semantics=("parallel",)),
    )(edge, w1, b1, w2, b2, w3t, b3)


# --------------------------------------------------------------------------
# Kernel 2: the entire NAO forward for one batch element, fully fused.
#           grid=(B,) "parallel"; activation v never leaves VMEM.
# --------------------------------------------------------------------------
def _nao_fused_kernel(xy_ref, wqk_ref, bqk_ref, ln0_g_ref, ln0_b_ref,
                      ln_g_ref, ln_b_ref, wcat_ref, o_ref,
                      *, nlayer, head, dk, ntoken, scale, dxdy):
    hd = head * dk
    xy = xy_ref[0]                                                        # (S, F)

    # fcn[0]: LayerNorm over the whole (S, F) block
    mu = jnp.mean(xy)
    var = jnp.mean((xy - mu) ** 2)
    v = (xy - mu) * jax.lax.rsqrt(var + LN_EPS) * ln0_g_ref[...] + ln0_b_ref[...]

    # Intermediate multi-head linear-attention layers (statically unrolled; nlayer
    # is tiny).  All heads are fused into two wide matmuls per layer:
    #   sum_h Q_h @ (K_h^T @ V)  ==  Q_all @ (K_all^T @ V)
    # with Q_all = [Q_0 | ... | Q_{H-1}], K_all likewise (block matmul identity).
    for j in range(nlayer - 1):
        qk = jnp.dot(v, wqk_ref[j], preferred_element_type=jnp.float32) + bqk_ref[j]
        q_all = qk[:, :hd]                                                # (S, H*dk)
        k_all = qk[:, hd:]                                                # (S, H*dk)
        kv_all = jax.lax.dot_general(k_all, v, (((0,), (0,)), ((), ())),
                                     preferred_element_type=jnp.float32)  # (H*dk, F)
        mid = jnp.dot(q_all, kv_all, preferred_element_type=jnp.float32) * scale
        # LayerNorm over feature_dim (fcn[j+1]) + residual
        mu2 = jnp.mean(mid, axis=-1, keepdims=True)
        var2 = jnp.mean((mid - mu2) ** 2, axis=-1, keepdims=True)
        v = (mid - mu2) * jax.lax.rsqrt(var2 + LN_EPS) * ln_g_ref[j] + ln_b_ref[j] + v

    # ----- final output layer (all heads fused, W@Q refactored) -----
    W = wcat_ref[...]                                                     # (ntoken, S)
    Wv = jnp.dot(W, v, preferred_element_type=jnp.float32)                # (ntoken, F)
    Wsum = jnp.sum(W, axis=-1, keepdims=True)                             # (ntoken, 1)
    vf = v[:ntoken, :]                                                    # (ntoken, F)
    xyf = xy[:ntoken, :]                                                  # (ntoken, F)
    qkw = wqk_ref[nlayer - 1]                                             # (F, 2*H*dk)
    bqkl = bqk_ref[nlayer - 1]                                            # (1, 2*H*dk)
    # K projection only on the first ntoken rows, all heads in one matmul:
    kf_all = (jnp.dot(vf, qkw[:, hd:], preferred_element_type=jnp.float32)
              + bqkl[:, hd:])                                             # (ntoken, H*dk)
    kv_all = jax.lax.dot_general(kf_all, xyf, (((0,), (0,)), ((), ())),
                                 preferred_element_type=jnp.float32)      # (H*dk, F)
    # W @ Q_all == (W@V) @ wq_all + rowsum(W) * bq_all   (Q_all = V@wq_all + bq_all)
    wq_all = (jnp.dot(Wv, qkw[:, :hd], preferred_element_type=jnp.float32)
              + Wsum * bqkl[:, :hd])                                      # (ntoken, H*dk)
    acc = jnp.dot(wq_all, kv_all, preferred_element_type=jnp.float32)     # (ntoken, F)
    # scalar factors hoisted: dx*dy (outer) * dx*dy/sqrt(dk) (inside KV)
    o_ref[0] = acc * (dxdy * scale)


def nao_fused_forward(xy, wqk, bqk, ln0_g, ln0_b, ln_g, ln_b, wcat,
                      *, nlayer, head, dk, ntoken, scale, dxdy):
    B, S, F = xy.shape
    kern = functools.partial(_nao_fused_kernel, nlayer=nlayer, head=head, dk=dk,
                             ntoken=ntoken, scale=scale, dxdy=dxdy)
    return pl.pallas_call(
        kern,
        out_shape=jax.ShapeDtypeStruct((B, ntoken, F), jnp.float32),
        grid=(B,),
        in_specs=[
            pl.BlockSpec((1, S, F), lambda b: (b, 0, 0)),      # xy (per-batch block)
            pl.BlockSpec(wqk.shape, lambda b: (0, 0, 0)),      # stacked Q/K weights
            pl.BlockSpec(bqk.shape, lambda b: (0, 0, 0)),      # stacked Q/K biases
            pl.BlockSpec(ln0_g.shape, lambda b: (0, 0)),       # fcn[0] gamma
            pl.BlockSpec(ln0_b.shape, lambda b: (0, 0)),       # fcn[0] beta
            pl.BlockSpec(ln_g.shape, lambda b: (0, 0, 0)),     # fcn[1:] gamma
            pl.BlockSpec(ln_b.shape, lambda b: (0, 0, 0)),     # fcn[1:] beta
            pl.BlockSpec(wcat.shape, lambda b: (0, 0)),        # cat(weight, weightf)
        ],
        out_specs=pl.BlockSpec((1, ntoken, F), lambda b: (b, 0, 0)),
        compiler_params=pltpu.CompilerParams(dimension_semantics=("parallel",)),
    )(xy, wqk, bqk, ln0_g, ln0_b, ln_g, ln_b, wcat)


# --------------------------------------------------------------------------
# Full NAO forward (Pallas path): 2 pallas_calls total.
# --------------------------------------------------------------------------
def nao_forward(xy, params, cfg):
    ntoken, head, dk, nlayer = cfg["ntoken"], cfg["head"], cfg["dk"], cfg["nlayer"]
    F = xy.shape[-1]
    dxdy = cfg["dx"] * cfg["dy"]
    scale = dxdy / math.sqrt(dk)          # dx*dy * sqrt_dk_inv

    # Both edge MLPs in one kernel, lane-dense (2, ntoken^2) output.
    wmaps = edge_mlp_fused(params["edge"], params["kernel"], params["kernelf"])
    wcat = jnp.concatenate([wmaps[0].reshape(ntoken, ntoken),
                            wmaps[1].reshape(ntoken, ntoken)], axis=-1)   # (ntoken, 2*ntoken)

    # Stack the per-head Q/K projections into one (F, 2*H*dk) weight per layer.
    # Column layout: [Q head0 | ... | Q head(H-1) | K head0 | ... | K head(H-1)].
    wqk = jnp.concatenate([params["wq"], params["wk"]], axis=1)           # (L, 2H, F, dk)
    wqk = jnp.transpose(wqk, (0, 2, 1, 3)).reshape(nlayer, F, 2 * head * dk)
    bqk = jnp.concatenate([params["bq"], params["bk"]], axis=1)           # (L, 2H, 1, dk)
    bqk = jnp.transpose(bqk, (0, 2, 1, 3)).reshape(nlayer, 1, 2 * head * dk)

    return nao_fused_forward(xy, wqk, bqk, params["ln0_g"], params["ln0_b"],
                             params["ln_g"], params["ln_b"], wcat,
                             nlayer=nlayer, head=head, dk=dk, ntoken=ntoken,
                             scale=scale, dxdy=dxdy)


# --------------------------------------------------------------------------
# Pure-JAX reference (mirrors the PyTorch forward) for validation
# --------------------------------------------------------------------------
def nao_reference(xy, params, cfg):
    ntoken, head, dk, nlayer = cfg["ntoken"], cfg["head"], cfg["dk"], cfg["nlayer"]
    dxdy = cfg["dx"] * cfg["dy"]
    sqrt_dk_inv = 1.0 / math.sqrt(dk)

    def mlp(x, p):
        w1, b1, w2, b2, w3, b3 = p
        h = _leaky(x @ w1 + b1)
        h = _leaky(h @ w2 + b2)
        return h @ w3 + b3

    def ln(x, g, b, axes):
        mu = jnp.mean(x, axis=axes, keepdims=True)
        var = jnp.mean((x - mu) ** 2, axis=axes, keepdims=True)
        return (x - mu) / jnp.sqrt(var + LN_EPS) * g + b

    weight = mlp(params["edge"], params["kernel"]).reshape(ntoken, ntoken)
    weightf = mlp(params["edge"], params["kernelf"]).reshape(ntoken, ntoken)
    wcat = jnp.concatenate([weight, weightf], axis=-1)

    v = ln(xy, params["ln0_g"], params["ln0_b"], axes=(-2, -1))
    for j in range(nlayer - 1):
        mid = jnp.zeros_like(v)
        for h in range(head):
            q = v @ params["wq"][j, h] + params["bq"][j, h]
            k = v @ params["wk"][j, h] + params["bk"][j, h]
            kv = dxdy * jnp.einsum("bsd,bsf->bdf", k, v) * sqrt_dk_inv
            mid = mid + jnp.einsum("bsd,bdf->bsf", q, kv)
        v = ln(mid, params["ln_g"][j], params["ln_b"][j], axes=(-1,)) + v

    out = jnp.zeros((xy.shape[0], ntoken, xy.shape[-1]), jnp.float32)
    for h in range(head):
        q = v @ params["wq"][nlayer - 1, h] + params["bq"][nlayer - 1, h]
        k = v @ params["wk"][nlayer - 1, h] + params["bk"][nlayer - 1, h]
        kv = dxdy * jnp.einsum("bnd,bnf->bdf", k[:, :ntoken], xy[:, :ntoken]) * sqrt_dk_inv
        out = out + dxdy * jnp.einsum("nt,btd,bdf->bnf", wcat, q, kv)
    return out


# --------------------------------------------------------------------------
# Setup helpers (grid / edges / deterministic parameter init)
# --------------------------------------------------------------------------
def make_grid_edges(ngrid):
    lin = jnp.linspace(0.0, 1.0, ngrid, dtype=jnp.float32)
    gx = jnp.broadcast_to(lin[:, None], (ngrid, ngrid))
    gy = jnp.broadcast_to(lin[None, :], (ngrid, ngrid))
    grid = jnp.stack([gx, gy], axis=-1).reshape(ngrid * ngrid, 2)
    ntoken = ngrid * ngrid
    gi = jnp.broadcast_to(grid[:, None, :], (ntoken, ntoken, 2))
    gj = jnp.broadcast_to(grid[None, :, :], (ntoken, ntoken, 2))
    edge = jnp.concatenate([gi, gj], axis=-1).reshape(ntoken * ntoken, 4)
    dx = float(lin[1] - lin[0])
    return edge, dx, dx


def linear_init(key, fan_in, fan_out):
    kw, kb = jax.random.split(key)
    bound = 1.0 / math.sqrt(fan_in)
    w = jax.random.uniform(kw, (fan_in, fan_out), jnp.float32, -bound, bound)
    b = jax.random.uniform(kb, (fan_out,), jnp.float32, -bound, bound)
    return w, b


def densenet_init(key, dims):
    ps = []
    ks = jax.random.split(key, len(dims) - 1)
    for i in range(len(dims) - 1):
        w, b = linear_init(ks[i], dims[i], dims[i + 1])
        ps += [w, b]
    return tuple(ps)


if __name__ == "__main__":
    # Small, module-consistent sizes: ntoken = ngrid^2, seq = 2*ntoken, out_dim = ntoken
    ngrid = 4
    ntoken = ngrid * ngrid      # 16
    head = 2
    dk = 16
    nlayer = 3
    feature_dim = 8
    B = 2
    S = 2 * ntoken              # 32

    edge, dx, dy = make_grid_edges(ngrid)

    key = jax.random.PRNGKey(0)
    keys = jax.random.split(key, 6)

    kernel_p = densenet_init(keys[0], [4, 32, 64, 1])
    kernelf_p = densenet_init(keys[1], [4, 32, 64, 1])

    kq = jax.random.split(keys[2], nlayer * head)
    kk = jax.random.split(keys[3], nlayer * head)
    wq, bq, wk, bk = [], [], [], []
    for j in range(nlayer):
        for h in range(head):
            w, b = linear_init(kq[j * head + h], feature_dim, dk)
            wq.append(w); bq.append(b)
            w, b = linear_init(kk[j * head + h], feature_dim, dk)
            wk.append(w); bk.append(b)
    wq = jnp.stack(wq).reshape(nlayer, head, feature_dim, dk)
    bq = jnp.stack(bq).reshape(nlayer, head, 1, dk)
    wk = jnp.stack(wk).reshape(nlayer, head, feature_dim, dk)
    bk = jnp.stack(bk).reshape(nlayer, head, 1, dk)

    params = {
        "edge": edge,
        "kernel": kernel_p,
        "kernelf": kernelf_p,
        "wq": wq, "bq": bq, "wk": wk, "bk": bk,
        # PyTorch LayerNorm init: weight = 1, bias = 0 (deterministic)
        "ln0_g": jnp.ones((S, feature_dim), jnp.float32),
        "ln0_b": jnp.zeros((S, feature_dim), jnp.float32),
        "ln_g": jnp.ones((nlayer - 1, 1, feature_dim), jnp.float32),
        "ln_b": jnp.zeros((nlayer - 1, 1, feature_dim), jnp.float32),
    }
    cfg = {"ntoken": ntoken, "head": head, "dk": dk, "nlayer": nlayer, "dx": dx, "dy": dy}

    xy = jax.random.normal(keys[4], (B, S, feature_dim), jnp.float32)

    fwd = jax.jit(lambda xy_, params_: nao_forward(xy_, params_, cfg))
    out = fwd(xy, params)
    out = jax.block_until_ready(out)

    ref = nao_reference(xy, params, cfg)
    np.testing.assert_allclose(np.asarray(out), np.asarray(ref), rtol=2e-2, atol=1e-4)
    assert out.shape == (B, ntoken, feature_dim)
    print("KERNEL_OK")
</pallas_src>

<mosaic_0001>
module attributes {stable_mosaic.version = 11 : i64} {
  func.func @_edge_mlp_kernel(%arg0: i32, %arg1: memref<256x4xf32, #tpu.memory_space<vmem>>, %arg2: memref<4x64xf32, #tpu.memory_space<vmem>>, %arg3: memref<1x64xf32, #tpu.memory_space<vmem>>, %arg4: memref<64x128xf32, #tpu.memory_space<vmem>>, %arg5: memref<1x128xf32, #tpu.memory_space<vmem>>, %arg6: memref<2x128xf32, #tpu.memory_space<vmem>>, %arg7: memref<2x1xf32, #tpu.memory_space<vmem>>, %arg8: memref<2x256xf32, #tpu.memory_space<vmem>>) attributes {dimension_semantics = [#tpu.dimension_semantics<parallel>], iteration_bounds = array<i64: 1>, scalar_prefetch = 0 : i64, scratch_operands = 0 : i64, tpu.core_type = #tpu.core_type<tc>, window_params = [{transform_indices = @transform_0, window_bounds = array<i64: 256, 4>}, {pipeline_mode = #tpu.pipeline_mode<synchronous>, transform_indices = @transform_1, window_bounds = array<i64: 4, 64>}, {pipeline_mode = #tpu.pipeline_mode<synchronous>, transform_indices = @transform_2, window_bounds = array<i64: 1, 64>}, {pipeline_mode = #tpu.pipeline_mode<synchronous>, transform_indices = @transform_3, window_bounds = array<i64: 64, 128>}, {pipeline_mode = #tpu.pipeline_mode<synchronous>, transform_indices = @transform_4, window_bounds = array<i64: 1, 128>}, {pipeline_mode = #tpu.pipeline_mode<synchronous>, transform_indices = @transform_5, window_bounds = array<i64: 2, 128>}, {pipeline_mode = #tpu.pipeline_mode<synchronous>, transform_indices = @transform_6, window_bounds = array<i64: 2, 1>}, {transform_indices = @transform_7, window_bounds = array<i64: 2, 256>}]} {
    %c0 = arith.constant 0 : index
    %c0_0 = arith.constant 0 : index
    %0 = vector.load %arg1[%c0, %c0_0] : memref<256x4xf32, #tpu.memory_space<vmem>>, vector<256x4xf32>
    %c0_1 = arith.constant 0 : index
    %c0_2 = arith.constant 0 : index
    %1 = vector.load %arg2[%c0_1, %c0_2] : memref<4x64xf32, #tpu.memory_space<vmem>>, vector<4x64xf32>
    %cst = arith.constant dense<0.000000e+00> : vector<256x64xf32>
    %2 = tpu.matmul %0, %1, %cst {dimension_numbers = #tpu.dot_dimension_numbers<[1], [0], [0], [1], [0, 0, 1, 1], [], []>} : vector<256x4xf32>, vector<4x64xf32>, vector<256x64xf32> -> vector<256x64xf32>
    %c0_3 = arith.constant 0 : index
    %c0_4 = arith.constant 0 : index
    %3 = vector.load %arg3[%c0_3, %c0_4] : memref<1x64xf32, #tpu.memory_space<vmem>>, vector<1x64xf32>
    %4 = vector.broadcast %3 : vector<1x64xf32> to vector<256x64xf32>
    %5 = arith.addf %2, %4 : vector<256x64xf32>
    %cst_5 = arith.constant 0.000000e+00 : f32
    %6 = vector.broadcast %cst_5 : f32 to vector<256x64xf32>
    %7 = arith.cmpf oge, %5, %6 : vector<256x64xf32>
    %cst_6 = arith.constant 0.00999999977 : f32
    %8 = vector.broadcast %cst_6 : f32 to vector<256x64xf32>
    %9 = arith.mulf %8, %5 : vector<256x64xf32>
    %10 = arith.select %7, %5, %9 : vector<256x64xi1>, vector<256x64xf32>
    %c0_7 = arith.constant 0 : index
    %c0_8 = arith.constant 0 : index
    %11 = vector.load %arg4[%c0_7, %c0_8] : memref<64x128xf32, #tpu.memory_space<vmem>>, vector<64x128xf32>
    %cst_9 = arith.constant dense<0.000000e+00> : vector<256x128xf32>
    %12 = tpu.matmul %10, %11, %cst_9 {dimension_numbers = #tpu.dot_dimension_numbers<[1], [0], [0], [1], [0, 0, 1, 1], [], []>} : vector<256x64xf32>, vector<64x128xf32>, vector<256x128xf32> -> vector<256x128xf32>
    %c0_10 = arith.constant 0 : index
    %c0_11 = arith.constant 0 : index
    %13 = vector.load %arg5[%c0_10, %c0_11] : memref<1x128xf32, #tpu.memory_space<vmem>>, vector<1x128xf32>
    %14 = vector.broadcast %13 : vector<1x128xf32> to vector<256x128xf32>
    %15 = arith.addf %12, %14 : vector<256x128xf32>
    %cst_12 = arith.constant 0.000000e+00 : f32
    %16 = vector.broadcast %cst_12 : f32 to vector<256x128xf32>
    %17 = arith.cmpf oge, %15, %16 : vector<256x128xf32>
    %cst_13 = arith.constant 0.00999999977 : f32
    %18 = vector.broadcast %cst_13 : f32 to vector<256x128xf32>
    %19 = arith.mulf %18, %15 : vector<256x128xf32>
    %20 = arith.select %17, %15, %19 : vector<256x128xi1>, vector<256x128xf32>
    %c0_14 = arith.constant 0 : index
    %c0_15 = arith.constant 0 : index
    %21 = vector.load %arg6[%c0_14, %c0_15] : memref<2x128xf32, #tpu.memory_space<vmem>>, vector<2x128xf32>
    %cst_16 = arith.constant dense<0.000000e+00> : vector<2x256xf32>
    %22 = tpu.matmul %21, %20, %cst_16 {dimension_numbers = #tpu.dot_dimension_numbers<[1], [1], [0], [0], [0, 0, 1, 0], [], []>} : vector<2x128xf32>, vector<256x128xf32>, vector<2x256xf32> -> vector<2x256xf32>
    %c0_17 = arith.constant 0 : index
    %c0_18 = arith.constant 0 : index
    %23 = vector.load %arg7[%c0_17, %c0_18] : memref<2x1xf32, #tpu.memory_space<vmem>>, vector<2x1xf32>
    %24 = vector.broadcast %23 : vector<2x1xf32> to vector<2x256xf32>
    %25 = arith.addf %22, %24 : vector<2x256xf32>
    %c0_19 = arith.constant 0 : index
    %c0_20 = arith.constant 0 : index
    %26 = vector.load %arg8[%c0_19, %c0_20] : memref<2x256xf32, #tpu.memory_space<vmem>>, vector<2x256xf32>
    tpu.vector_store %arg8[%c0_19, %c0_20], %25 {strides = array<i32>} : memref<2x256xf32, #tpu.memory_space<vmem>>, vector<2x256xf32>,
    return
  }
  func.func @transform_0(%arg0: i32) -> (i32, i32) {
    %c0_i32 = arith.constant 0 : i32
    %c0_i32_0 = arith.constant 0 : i32
    return %arg0, %c0_i32 : i32, i32
  }
  func.func @transform_1(%arg0: i32) -> (i32, i32) {
    %c0_i32 = arith.constant 0 : i32
    %c0_i32_0 = arith.constant 0 : i32
    %c0_i32_1 = arith.constant 0 : i32
    return %c0_i32, %c0_i32_0 : i32, i32
  }
  func.func @transform_2(%arg0: i32) -> (i32, i32) {
    %c0_i32 = arith.constant 0 : i32
    %c0_i32_0 = arith.constant 0 : i32
    %c0_i32_1 = arith.constant 0 : i32
    return %c0_i32, %c0_i32_0 : i32, i32
  }
  func.func @transform_3(%arg0: i32) -> (i32, i32) {
    %c0_i32 = arith.constant 0 : i32
    %c0_i32_0 = arith.constant 0 : i32
    %c0_i32_1 = arith.constant 0 : i32
    return %c0_i32, %c0_i32_0 : i32, i32
  }
  func.func @transform_4(%arg0: i32) -> (i32, i32) {
    %c0_i32 = arith.constant 0 : i32
    %c0_i32_0 = arith.constant 0 : i32
    %c0_i32_1 = arith.constant 0 : i32
    return %c0_i32, %c0_i32_0 : i32, i32
  }
  func.func @transform_5(%arg0: i32) -> (i32, i32) {
    %c0_i32 = arith.constant 0 : i32
    %c0_i32_0 = arith.constant 0 : i32
    %c0_i32_1 = arith.constant 0 : i32
    return %c0_i32, %c0_i32_0 : i32, i32
  }
  func.func @transform_6(%arg0: i32) -> (i32, i32) {
    %c0_i32 = arith.constant 0 : i32
    %c0_i32_0 = arith.constant 0 : i32
    %c0_i32_1 = arith.constant 0 : i32
    return %c0_i32, %c0_i32_0 : i32, i32
  }
  func.func @transform_7(%arg0: i32) -> (i32, i32) {
    %c0_i32 = arith.constant 0 : i32
    %c0_i32_0 = arith.constant 0 : i32
    return %c0_i32, %arg0 : i32, i32
  }
}

module attributes {stable_mosaic.version = 11 : i64} {
  func.func @_nao_fused_kernel(%arg0: i32, %arg1: memref<1x32x8xf32, #tpu.memory_space<vmem>>, %arg2: memref<3x8x64xf32, #tpu.memory_space<vmem>>, %arg3: memref<3x1x64xf32, #tpu.memory_space<vmem>>, %arg4: memref<32x8xf32, #tpu.memory_space<vmem>>, %arg5: memref<32x8xf32, #tpu.memory_space<vmem>>, %arg6: memref<2x1x8xf32, #tpu.memory_space<vmem>>, %arg7: memref<2x1x8xf32, #tpu.memory_space<vmem>>, %arg8: memref<16x32xf32, #tpu.memory_space<vmem>>, %arg9: memref<1x16x8xf32, #tpu.memory_space<vmem>>) attributes {dimension_semantics = [#tpu.dimension_semantics<parallel>], iteration_bounds = array<i64: 2>, scalar_prefetch = 0 : i64, scratch_operands = 0 : i64, tpu.core_type = #tpu.core_type<tc>, window_params = [{transform_indices = @transform_0, window_bounds = array<i64: 1, 32, 8>}, {pipeline_mode = #tpu.pipeline_mode<synchronous>, transform_indices = @transform_1, window_bounds = array<i64: 3, 8, 64>}, {pipeline_mode = #tpu.pipeline_mode<synchronous>, transform_indices = @transform_2, window_bounds = array<i64: 3, 1, 64>}, {pipeline_mode = #tpu.pipeline_mode<synchronous>, transform_indices = @transform_3, window_bounds = array<i64: 32, 8>}, {pipeline_mode = #tpu.pipeline_mode<synchronous>, transform_indices = @transform_4, window_bounds = array<i64: 32, 8>}, {pipeline_mode = #tpu.pipeline_mode<synchronous>, transform_indices = @transform_5, window_bounds = array<i64: 2, 1, 8>}, {pipeline_mode = #tpu.pipeline_mode<synchronous>, transform_indices = @transform_6, window_bounds = array<i64: 2, 1, 8>}, {pipeline_mode = #tpu.pipeline_mode<synchronous>, transform_indices = @transform_7, window_bounds = array<i64: 16, 32>}, {transform_indices = @transform_8, window_bounds = array<i64: 1, 16, 8>}]} {
    %c0 = arith.constant 0 : index
    %c0_0 = arith.constant 0 : index
    %c0_1 = arith.constant 0 : index
    %0 = vector.load %arg1[%c0, %c0_0, %c0_1] : memref<1x32x8xf32, #tpu.memory_space<vmem>>, vector<1x32x8xf32>
    %1 = vector.shape_cast %0 : vector<1x32x8xf32> to vector<32x8xf32>
    %2 = vector.shape_cast %1 : vector<32x8xf32> to vector<1x32x8xf32>
    %cst = arith.constant dense<0.000000e+00> : vector<1xf32>
    %3 = vector.multi_reduction <add>, %2, %cst [1, 2] : vector<1x32x8xf32> to vector<1xf32>
    %4 = vector.shape_cast %3 : vector<1xf32> to vector<1x1x1xf32>
    %5 = vector.extract %4[0, 0, 0] : f32 from vector<1x1x1xf32>
    %cst_2 = arith.constant 2.560000e+02 : f32
    %6 = arith.divf %5, %cst_2 : f32
    %7 = vector.broadcast %6 : f32 to vector<32x8xf32>
    %8 = arith.subf %1, %7 : vector<32x8xf32>
    %9 = arith.mulf %8, %8 : vector<32x8xf32>
    %10 = vector.shape_cast %9 : vector<32x8xf32> to vector<1x32x8xf32>
    %cst_3 = arith.constant dense<0.000000e+00> : vector<1xf32>
    %11 = vector.multi_reduction <add>, %10, %cst_3 [1, 2] : vector<1x32x8xf32> to vector<1xf32>
    %12 = vector.shape_cast %11 : vector<1xf32> to vector<1x1x1xf32>
    %13 = vector.extract %12[0, 0, 0] : f32 from vector<1x1x1xf32>
    %cst_4 = arith.constant 2.560000e+02 : f32
    %14 = arith.divf %13, %cst_4 : f32
    %15 = vector.broadcast %6 : f32 to vector<32x8xf32>
    %16 = arith.subf %1, %15 : vector<32x8xf32>
    %cst_5 = arith.constant 9.99999974E-6 : f32
    %17 = arith.addf %14, %cst_5 : f32
    %18 = math.rsqrt %17 : f32
    %19 = vector.broadcast %18 : f32 to vector<32x8xf32>
    %20 = arith.mulf %16, %19 : vector<32x8xf32>
    %c0_6 = arith.constant 0 : index
    %c0_7 = arith.constant 0 : index
    %21 = vector.load %arg4[%c0_6, %c0_7] : memref<32x8xf32, #tpu.memory_space<vmem>>, vector<32x8xf32>
    %22 = arith.mulf %20, %21 : vector<32x8xf32>
    %c0_8 = arith.constant 0 : index
    %c0_9 = arith.constant 0 : index
    %23 = vector.load %arg5[%c0_8, %c0_9] : memref<32x8xf32, #tpu.memory_space<vmem>>, vector<32x8xf32>
    %24 = arith.addf %22, %23 : vector<32x8xf32>
    %c0_10 = arith.constant 0 : index
    %c0_11 = arith.constant 0 : index
    %c0_12 = arith.constant 0 : index
    %25 = vector.load %arg2[%c0_10, %c0_11, %c0_12] : memref<3x8x64xf32, #tpu.memory_space<vmem>>, vector<1x8x64xf32>
    %26 = vector.shape_cast %25 : vector<1x8x64xf32> to vector<8x64xf32>
    %cst_13 = arith.constant dense<0.000000e+00> : vector<32x64xf32>
    %27 = tpu.matmul %24, %26, %cst_13 {dimension_numbers = #tpu.dot_dimension_numbers<[1], [0], [0], [1], [0, 0, 1, 1], [], []>} : vector<32x8xf32>, vector<8x64xf32>, vector<32x64xf32> -> vector<32x64xf32>
    %c0_14 = arith.constant 0 : index
    %c0_15 = arith.constant 0 : index
    %c0_16 = arith.constant 0 : index
    %28 = vector.load %arg3[%c0_14, %c0_15, %c0_16] : memref<3x1x64xf32, #tpu.memory_space<vmem>>, vector<1x1x64xf32>
    %29 = vector.shape_cast %28 : vector<1x1x64xf32> to vector<1x64xf32>
    %30 = vector.broadcast %29 : vector<1x64xf32> to vector<32x64xf32>
    %31 = arith.addf %27, %30 : vector<32x64xf32>
    %32 = vector.extract_strided_slice %31 {offsets = [0, 0], sizes = [32, 32], strides = [1, 1]} : vector<32x64xf32> to vector<32x32xf32>
    %33 = vector.extract_strided_slice %31 {offsets = [0, 32], sizes = [32, 32], strides = [1, 1]} : vector<32x64xf32> to vector<32x32xf32>
    %cst_17 = arith.constant dense<0.000000e+00> : vector<32x8xf32>
    %34 = tpu.matmul %33, %24, %cst_17 {dimension_numbers = #tpu.dot_dimension_numbers<[0], [0], [1], [1], [0, 1, 1, 1], [], []>} : vector<32x32xf32>, vector<32x8xf32>, vector<32x8xf32> -> vector<32x8xf32>
    %cst_18 = arith.constant dense<0.000000e+00> : vector<32x8xf32>
    %35 = tpu.matmul %32, %34, %cst_18 {dimension_numbers = #tpu.dot_dimension_numbers<[1], [0], [0], [1], [0, 0, 1, 1], [], []>} : vector<32x32xf32>, vector<32x8xf32>, vector<32x8xf32> -> vector<32x8xf32>
    %cst_19 = arith.constant 0.0277777798 : f32
    %36 = vector.broadcast %cst_19 : f32 to vector<32x8xf32>
    %37 = arith.mulf %35, %36 : vector<32x8xf32>
    %cst_20 = arith.constant dense<0.000000e+00> : vector<32xf32>
    %38 = vector.multi_reduction <add>, %37, %cst_20 [1] : vector<32x8xf32> to vector<32xf32>
    %39 = vector.shape_cast %38 : vector<32xf32> to vector<32x1xf32>
    %cst_21 = arith.constant 8.000000e+00 : f32
    %40 = vector.broadcast %cst_21 : f32 to vector<32x1xf32>
    %41 = arith.divf %39, %40 : vector<32x1xf32>
    %42 = vector.broadcast %41 : vector<32x1xf32> to vector<32x8xf32>
    %43 = arith.subf %37, %42 : vector<32x8xf32>
    %44 = arith.mulf %43, %43 : vector<32x8xf32>
    %cst_22 = arith.constant dense<0.000000e+00> : vector<32xf32>
    %45 = vector.multi_reduction <add>, %44, %cst_22 [1] : vector<32x8xf32> to vector<32xf32>
    %46 = vector.shape_cast %45 : vector<32xf32> to vector<32x1xf32>
    %cst_23 = arith.constant 8.000000e+00 : f32
    %47 = vector.broadcast %cst_23 : f32 to vector<32x1xf32>
    %48 = arith.divf %46, %47 : vector<32x1xf32>
    %49 = vector.broadcast %41 : vector<32x1xf32> to vector<32x8xf32>
    %50 = arith.subf %37, %49 : vector<32x8xf32>
    %cst_24 = arith.constant 9.99999974E-6 : f32
    %51 = vector.broadcast %cst_24 : f32 to vector<32x1xf32>
    %52 = arith.addf %48, %51 : vector<32x1xf32>
    %53 = math.rsqrt %52 : vector<32x1xf32>
    %54 = vector.broadcast %53 : vector<32x1xf32> to vector<32x8xf32>
    %55 = arith.mulf %50, %54 : vector<32x8xf32>
    %c0_25 = arith.constant 0 : index
    %c0_26 = arith.constant 0 : index
    %c0_27 = arith.constant 0 : index
    %56 = vector.load %arg6[%c0_25, %c0_26, %c0_27] : memref<2x1x8xf32, #tpu.memory_space<vmem>>, vector<1x1x8xf32>
    %57 = vector.shape_cast %56 : vector<1x1x8xf32> to vector<1x8xf32>
    %58 = vector.broadcast %57 : vector<1x8xf32> to vector<32x8xf32>
    %59 = arith.mulf %55, %58 : vector<32x8xf32>
    %c0_28 = arith.constant 0 : index
    %c0_29 = arith.constant 0 : index
    %c0_30 = arith.constant 0 : index
    %60 = vector.load %arg7[%c0_28, %c0_29, %c0_30] : memref<2x1x8xf32, #tpu.memory_space<vmem>>, vector<1x1x8xf32>
    %61 = vector.shape_cast %60 : vector<1x1x8xf32> to vector<1x8xf32>
    %62 = vector.broadcast %61 : vector<1x8xf32> to vector<32x8xf32>
    %63 = arith.addf %59, %62 : vector<32x8xf32>
    %64 = arith.addf %63, %24 : vector<32x8xf32>
    %c1 = arith.constant 1 : index
    %c0_31 = arith.constant 0 : index
    %c0_32 = arith.constant 0 : index
    %65 = vector.load %arg2[%c1, %c0_31, %c0_32] : memref<3x8x64xf32, #tpu.memory_space<vmem>>, vector<1x8x64xf32>
    %66 = vector.shape_cast %65 : vector<1x8x64xf32> to vector<8x64xf32>
    %cst_33 = arith.constant dense<0.000000e+00> : vector<32x64xf32>
    %67 = tpu.matmul %64, %66, %cst_33 {dimension_numbers = #tpu.dot_dimension_numbers<[1], [0], [0], [1], [0, 0, 1, 1], [], []>} : vector<32x8xf32>, vector<8x64xf32>, vector<32x64xf32> -> vector<32x64xf32>
    %c1_34 = arith.constant 1 : index
    %c0_35 = arith.constant 0 : index
    %c0_36 = arith.constant 0 : index
    %68 = vector.load %arg3[%c1_34, %c0_35, %c0_36] : memref<3x1x64xf32, #tpu.memory_space<vmem>>, vector<1x1x64xf32>
    %69 = vector.shape_cast %68 : vector<1x1x64xf32> to vector<1x64xf32>
    %70 = vector.broadcast %69 : vector<1x64xf32> to vector<32x64xf32>
    %71 = arith.addf %67, %70 : vector<32x64xf32>
    %72 = vector.extract_strided_slice %71 {offsets = [0, 0], sizes = [32, 32], strides = [1, 1]} : vector<32x64xf32> to vector<32x32xf32>
    %73 = vector.extract_strided_slice %71 {offsets = [0, 32], sizes = [32, 32], strides = [1, 1]} : vector<32x64xf32> to vector<32x32xf32>
    %cst_37 = arith.constant dense<0.000000e+00> : vector<32x8xf32>
    %74 = tpu.matmul %73, %64, %cst_37 {dimension_numbers = #tpu.dot_dimension_numbers<[0], [0], [1], [1], [0, 1, 1, 1], [], []>} : vector<32x32xf32>, vector<32x8xf32>, vector<32x8xf32> -> vector<32x8xf32>
    %cst_38 = arith.constant dense<0.000000e+00> : vector<32x8xf32>
    %75 = tpu.matmul %72, %74, %cst_38 {dimension_numbers = #tpu.dot_dimension_numbers<[1], [0], [0], [1], [0, 0, 1, 1], [], []>} : vector<32x32xf32>, vector<32x8xf32>, vector<32x8xf32> -> vector<32x8xf32>
    %cst_39 = arith.constant 0.0277777798 : f32
    %76 = vector.broadcast %cst_39 : f32 to vector<32x8xf32>
    %77 = arith.mulf %75, %76 : vector<32x8xf32>
    %cst_40 = arith.constant dense<0.000000e+00> : vector<32xf32>
    %78 = vector.multi_reduction <add>, %77, %cst_40 [1] : vector<32x8xf32> to vector<32xf32>
    %79 = vector.shape_cast %78 : vector<32xf32> to vector<32x1xf32>
    %cst_41 = arith.constant 8.000000e+00 : f32
    %80 = vector.broadcast %cst_41 : f32 to vector<32x1xf32>
    %81 = arith.divf %79, %80 : vector<32x1xf32>
    %82 = vector.broadcast %81 : vector<32x1xf32> to vector<32x8xf32>
    %83 = arith.subf %77, %82 : vector<32x8xf32>
    %84 = arith.mulf %83, %83 : vector<32x8xf32>
    %cst_42 = arith.constant dense<0.000000e+00> : vector<32xf32>
    %85 = vector.multi_reduction <add>, %84, %cst_42 [1] : vector<32x8xf32> to vector<32xf32>
    %86 = vector.shape_cast %85 : vector<32xf32> to vector<32x1xf32>
    %cst_43 = arith.constant 8.000000e+00 : f32
    %87 = vector.broadcast %cst_43 : f32 to vector<32x1xf32>
    %88 = arith.divf %86, %87 : vector<32x1xf32>
    %89 = vector.broadcast %81 : vector<32x1xf32> to vector<32x8xf32>
    %90 = arith.subf %77, %89 : vector<32x8xf32>
    %cst_44 = arith.constant 9.99999974E-6 : f32
    %91 = vector.broadcast %cst_44 : f32 to vector<32x1xf32>
    %92 = arith.addf %88, %91 : vector<32x1xf32>
    %93 = math.rsqrt %92 : vector<32x1xf32>
    %94 = vector.broadcast %93 : vector<32x1xf32> to vector<32x8xf32>
    %95 = arith.mulf %90, %94 : vector<32x8xf32>
    %c1_45 = arith.constant 1 : index
    %c0_46 = arith.constant 0 : index
    %c0_47 = arith.constant 0 : index
    %96 = vector.load %arg6[%c1_45, %c0_46, %c0_47] : memref<2x1x8xf32, #tpu.memory_space<vmem>>, vector<1x1x8xf32>
    %97 = vector.shape_cast %96 : vector<1x1x8xf32> to vector<1x8xf32>
    %98 = vector.broadcast %97 : vector<1x8xf32> to vector<32x8xf32>
    %99 = arith.mulf %95, %98 : vector<32x8xf32>
    %c1_48 = arith.constant 1 : index
    %c0_49 = arith.constant 0 : index
    %c0_50 = arith.constant 0 : index
    %100 = vector.load %arg7[%c1_48, %c0_49, %c0_50] : memref<2x1x8xf32, #tpu.memory_space<vmem>>, vector<1x1x8xf32>
    %101 = vector.shape_cast %100 : vector<1x1x8xf32> to vector<1x8xf32>
    %102 = vector.broadcast %101 : vector<1x8xf32> to vector<32x8xf32>
    %103 = arith.addf %99, %102 : vector<32x8xf32>
    %104 = arith.addf %103, %64 : vector<32x8xf32>
    %c0_51 = arith.constant 0 : index
    %c0_52 = arith.constant 0 : index
    %105 = vector.load %arg8[%c0_51, %c0_52] : memref<16x32xf32, #tpu.memory_space<vmem>>, vector<16x32xf32>
    %cst_53 = arith.constant dense<0.000000e+00> : vector<16x8xf32>
    %106 = tpu.matmul %105, %104, %cst_53 {dimension_numbers = #tpu.dot_dimension_numbers<[1], [0], [0], [1], [0, 0, 1, 1], [], []>} : vector<16x32xf32>, vector<32x8xf32>, vector<16x8xf32> -> vector<16x8xf32>
    %cst_54 = arith.constant dense<0.000000e+00> : vector<16xf32>
    %107 = vector.multi_reduction <add>, %105, %cst_54 [1] : vector<16x32xf32> to vector<16xf32>
    %108 = vector.shape_cast %107 : vector<16xf32> to vector<16x1xf32>
    %109 = vector.extract_strided_slice %104 {offsets = [0, 0], sizes = [16, 8], strides = [1, 1]} : vector<32x8xf32> to vector<16x8xf32>
    %110 = vector.extract_strided_slice %1 {offsets = [0, 0], sizes = [16, 8], strides = [1, 1]} : vector<32x8xf32> to vector<16x8xf32>
    %c2 = arith.constant 2 : index
    %c0_55 = arith.constant 0 : index
    %c0_56 = arith.constant 0 : index
    %111 = vector.load %arg2[%c2, %c0_55, %c0_56] : memref<3x8x64xf32, #tpu.memory_space<vmem>>, vector<1x8x64xf32>
    %112 = vector.shape_cast %111 : vector<1x8x64xf32> to vector<8x64xf32>
    %c2_57 = arith.constant 2 : index
    %c0_58 = arith.constant 0 : index
    %c0_59 = arith.constant 0 : index
    %113 = vector.load %arg3[%c2_57, %c0_58, %c0_59] : memref<3x1x64xf32, #tpu.memory_space<vmem>>, vector<1x1x64xf32>
    %114 = vector.shape_cast %113 : vector<1x1x64xf32> to vector<1x64xf32>
    %115 = vector.extract_strided_slice %112 {offsets = [0, 32], sizes = [8, 32], strides = [1, 1]} : vector<8x64xf32> to vector<8x32xf32>
    %cst_60 = arith.constant dense<0.000000e+00> : vector<16x32xf32>
    %116 = tpu.matmul %109, %115, %cst_60 {dimension_numbers = #tpu.dot_dimension_numbers<[1], [0], [0], [1], [0, 0, 1, 1], [], []>} : vector<16x8xf32>, vector<8x32xf32>, vector<16x32xf32> -> vector<16x32xf32>
    %117 = vector.extract_strided_slice %114 {offsets = [0, 32], sizes = [1, 32], strides = [1, 1]} : vector<1x64xf32> to vector<1x32xf32>
    %118 = vector.broadcast %117 : vector<1x32xf32> to vector<16x32xf32>
    %119 = arith.addf %116, %118 : vector<16x32xf32>
    %cst_61 = arith.constant dense<0.000000e+00> : vector<32x8xf32>
    %120 = tpu.matmul %119, %110, %cst_61 {dimension_numbers = #tpu.dot_dimension_numbers<[0], [0], [1], [1], [0, 1, 1, 1], [], []>} : vector<16x32xf32>, vector<16x8xf32>, vector<32x8xf32> -> vector<32x8xf32>
    %121 = vector.extract_strided_slice %112 {offsets = [0, 0], sizes = [8, 32], strides = [1, 1]} : vector<8x64xf32> to vector<8x32xf32>
    %cst_62 = arith.constant dense<0.000000e+00> : vector<16x32xf32>
    %122 = tpu.matmul %106, %121, %cst_62 {dimension_numbers = #tpu.dot_dimension_numbers<[1], [0], [0], [1], [0, 0, 1, 1], [], []>} : vector<16x8xf32>, vector<8x32xf32>, vector<16x32xf32> -> vector<16x32xf32>
    %123 = vector.extract_strided_slice %114 {offsets = [0, 0], sizes = [1, 32], strides = [1, 1]} : vector<1x64xf32> to vector<1x32xf32>
    %124 = vector.broadcast %108 : vector<16x1xf32> to vector<16x32xf32>
    %125 = vector.broadcast %123 : vector<1x32xf32> to vector<16x32xf32>
    %126 = arith.mulf %124, %125 : vector<16x32xf32>
    %127 = arith.addf %122, %126 : vector<16x32xf32>
    %cst_63 = arith.constant dense<0.000000e+00> : vector<16x8xf32>
    %128 = tpu.matmul %127, %120, %cst_63 {dimension_numbers = #tpu.dot_dimension_numbers<[1], [0], [0], [1], [0, 0, 1, 1], [], []>} : vector<16x32xf32>, vector<32x8xf32>, vector<16x8xf32> -> vector<16x8xf32>
    %cst_64 = arith.constant 3.086420e-03 : f32
    %129 = vector.broadcast %cst_64 : f32 to vector<16x8xf32>
    %130 = arith.mulf %128, %129 : vector<16x8xf32>
    %c0_65 = arith.constant 0 : index
    %c0_66 = arith.constant 0 : index
    %c0_67 = arith.constant 0 : index
    %131 = vector.load %arg9[%c0_65, %c0_66, %c0_67] : memref<1x16x8xf32, #tpu.memory_space<vmem>>, vector<1x16x8xf32>
    %132 = vector.shape_cast %131 : vector<1x16x8xf32> to vector<16x8xf32>
    %133 = vector.shape_cast %130 : vector<16x8xf32> to vector<1x16x8xf32>
    tpu.vector_store %arg9[%c0_65, %c0_66, %c0_67], %133 {strides = array<i32>} : memref<1x16x8xf32, #tpu.memory_space<vmem>>, vector<1x16x8xf32>,
    return
  }
  func.func @transform_0(%arg0: i32) -> (i32, i32, i32) {
    %c0_i32 = arith.constant 0 : i32
    %c0_i32_0 = arith.constant 0 : i32
    %c0_i32_1 = arith.constant 0 : i32
    return %arg0, %c0_i32, %c0_i32_0 : i32, i32, i32
  }
  func.func @transform_1(%arg0: i32) -> (i32, i32, i32) {
    %c0_i32 = arith.constant 0 : i32
    %c0_i32_0 = arith.constant 0 : i32
    %c0_i32_1 = arith.constant 0 : i32
    %c0_i32_2 = arith.constant 0 : i32
    return %c0_i32, %c0_i32_0, %c0_i32_1 : i32, i32, i32
  }
  func.func @transform_2(%arg0: i32) -> (i32, i32, i32) {
    %c0_i32 = arith.constant 0 : i32
    %c0_i32_0 = arith.constant 0 : i32
    %c0_i32_1 = arith.constant 0 : i32
    %c0_i32_2 = arith.constant 0 : i32
    return %c0_i32, %c0_i32_0, %c0_i32_1 : i32, i32, i32
  }
  func.func @transform_3(%arg0: i32) -> (i32, i32) {
    %c0_i32 = arith.constant 0 : i32
    %c0_i32_0 = arith.constant 0 : i32
    %c0_i32_1 = arith.constant 0 : i32
    return %c0_i32, %c0_i32_0 : i32, i32
  }
  func.func @transform_4(%arg0: i32) -> (i32, i32) {
    %c0_i32 = arith.constant 0 : i32
    %c0_i32_0 = arith.constant 0 : i32
    %c0_i32_1 = arith.constant 0 : i32
    return %c0_i32, %c0_i32_0 : i32, i32
  }
  func.func @transform_5(%arg0: i32) -> (i32, i32, i32) {
    %c0_i32 = arith.constant 0 : i32
    %c0_i32_0 = arith.constant 0 : i32
    %c0_i32_1 = arith.constant 0 : i32
    %c0_i32_2 = arith.constant 0 : i32
    return %c0_i32, %c0_i32_0, %c0_i32_1 : i32, i32, i32
  }
  func.func @transform_6(%arg0: i32) -> (i32, i32, i32) {
    %c0_i32 = arith.constant 0 : i32
    %c0_i32_0 = arith.constant 0 : i32
    %c0_i32_1 = arith.constant 0 : i32
    %c0_i32_2 = arith.constant 0 : i32
    return %c0_i32, %c0_i32_0, %c0_i32_1 : i32, i32, i32
  }
  func.func @transform_7(%arg0: i32) -> (i32, i32) {
    %c0_i32 = arith.constant 0 : i32
    %c0_i32_0 = arith.constant 0 : i32
    %c0_i32_1 = arith.constant 0 : i32
    return %c0_i32, %c0_i32_0 : i32, i32
  }
  func.func @transform_8(%arg0: i32) -> (i32, i32, i32) {
    %c0_i32 = arith.constant 0 : i32
    %c0_i32_0 = arith.constant 0 : i32
    %c0_i32_1 = arith.constant 0 : i32
    return %arg0, %c0_i32, %c0_i32_0 : i32, i32, i32
  }
}

</mosaic_0001>

<llo_original>
// kernel: squeeze.2
$region0: #{squeeze.2}
  %s0 = inlined_call_operand.vmem [shape: f32[256], index: 0, kind: input, shape index: {}]
  %s1 = inlined_call_operand.vmem [shape: f32[16,16], index: 1, kind: output, shape index: {}]
  $region1: #{squeeze.2} parent=0
    #allocation0 [shape = 'u8[4096]{0}', space=vmem, size = 0x1000, scoped, tag = 'scoped mem for input reshape']
    %s3 = ssub.s32 4, 1
    %v4 = vld [vmem:[%s0] sm:%s3]
    %5 = vst [vmem:[#allocation0] sm:%s3] %v4
    %v6 = vld [vmem:[#allocation0] sm:$0x3]
    %vm7 = vcmask 130048
    %8 = vst.msk [vmem:[%s1] ss:$8 sm:$0x3] %vm7, %v6
    %v9 = vld [vmem:[#allocation0] sm:$0x3]
    %10 = vrot.lane.b32.xlu0 %v9, 112
    %v11 = vpop.permute.xlu0 %10
    %vm12 = vcmask 130048
    %s13 = scalar_lea.vmem %s1, 1
    %14 = vst.msk [vmem:[%s13] ss:$8 sm:$0x3] %vm12, %v11
    %v15 = vld [vmem:[#allocation0] sm:$0x3]
    %16 = vrot.lane.b32.xlu0 %v15, 96
    %v17 = vpop.permute.xlu0 %16
    %vm18 = vcmask 130048
    %s19 = scalar_lea.vmem %s1, 2
    %20 = vst.msk [vmem:[%s19] ss:$8 sm:$0x3] %vm18, %v17
    %v21 = vld [vmem:[#allocation0] sm:$0x3]
    %22 = vrot.lane.b32.xlu0 %v21, 80
    %v23 = vpop.permute.xlu0 %22
    %vm24 = vcmask 130048
    %s25 = scalar_lea.vmem %s1, 3
    %26 = vst.msk [vmem:[%s25] ss:$8 sm:$0x3] %vm24, %v23
    %v27 = vld [vmem:[#allocation0] sm:$0x3]
    %28 = vrot.lane.b32.xlu0 %v27, 64
    %v29 = vpop.permute.xlu0 %28
    %vm30 = vcmask 130048
    %s31 = scalar_lea.vmem %s1, 4
    %32 = vst.msk [vmem:[%s31] ss:$8 sm:$0x3] %vm30, %v29
    %v33 = vld [vmem:[#allocation0] sm:$0x3]
    %34 = vrot.lane.b32.xlu0 %v33, 48
    %v35 = vpop.permute.xlu0 %34
    %vm36 = vcmask 130048
    %s37 = scalar_lea.vmem %s1, 5
    %38 = vst.msk [vmem:[%s37] ss:$8 sm:$0x3] %vm36, %v35
    %v39 = vld [vmem:[#allocation0] sm:$0x3]
    %40 = vrot.lane.b32.xlu0 %v39, 32
    %v41 = vpop.permute.xlu0 %40
    %vm42 = vcmask 130048
    %s43 = scalar_lea.vmem %s1, 6
    %44 = vst.msk [vmem:[%s43] ss:$8 sm:$0x3] %vm42, %v41
    %v45 = vld [vmem:[#allocation0] sm:$0x3]
    %46 = vrot.lane.b32.xlu0 %v45, 16
    %v47 = vpop.permute.xlu0 %46
    %vm48 = vcmask 130048
    %s49 = scalar_lea.vmem %s1, 7
    %50 = vst.msk [vmem:[%s49] ss:$8 sm:$0x3] %vm48, %v47

// kernel: _lambda_.2
$region0: #{_lambda_.2}
  #allocation0 [shape = 'u32[]', space=smem, size = 0x4, offset = 0x4, fixed_abs, tag = 'smem constant byte address 0x4 - core index']
  #allocation1 [shape = 'u32[72,128]{1,0:T(1,128)}', space=vmem, size = 0x9000, scoped, tag = 'internal scratch']
  %s0 = inlined_call_operand.vmem [shape: f32[256,4], index: 0, kind: input, shape index: {}]
  %s1 = inlined_call_operand.vmem [shape: f32[4,64], index: 1, kind: input, shape index: {}]
  %s2 = inlined_call_operand.vmem [shape: f32[1,64], index: 2, kind: input, shape index: {}]
  %s3 = inlined_call_operand.vmem [shape: f32[64,128], index: 3, kind: input, shape index: {}]
  %s4 = inlined_call_operand.vmem [shape: f32[1,128], index: 4, kind: input, shape index: {}]
  %s5 = inlined_call_operand.vmem [shape: f32[2,128], index: 5, kind: input, shape index: {}]
  %s6 = inlined_call_operand.vmem [shape: f32[2,1], index: 6, kind: input, shape index: {}]
  %s7 = inlined_call_operand.vmem [shape: f32[2,256], index: 7, kind: output, shape index: {}]
  %s8 = sld [smem:[#allocation0]]
  $region38: #{_lambda_.2} parent=0
    _
  %s10 = ssub.s32 1, %s8
  %s11 = scalar_select 0, %s10, %s8
  // Predicated region
  $region2: #{_lambda_.2} parent=0 // pred_check
    _
  $region3: #{_lambda_.2} parent=0 // pred_check_branch
    %13 = sbr.rel (0) target = $region5
  $region4: #{_lambda_.2} parent=0 // pred_region
    _
  $region5: #{_lambda_.2} parent=0 // pred_fallthru
    _
  // Predicated region
  $region6: #{_lambda_.2} parent=0 // pred_check
    _
  $region7: #{_lambda_.2} parent=0 // pred_check_branch
    %15 = sbr.rel (0) target = $region9
  $region8: #{_lambda_.2} parent=0 // pred_region
    _
  $region9: #{_lambda_.2} parent=0 // pred_fallthru
    _
  // Predicated region
  $region10: #{_lambda_.2} parent=0 // pred_check
    _
  $region11: #{_lambda_.2} parent=0 // pred_check_branch
    %17 = sbr.rel (0) target = $region13
  $region12: #{_lambda_.2} parent=0 // pred_region
    _
  $region13: #{_lambda_.2} parent=0 // pred_fallthru
    _
  // Predicated region
  $region14: #{_lambda_.2} parent=0 // pred_check
    _
  $region15: #{_lambda_.2} parent=0 // pred_check_branch
    %19 = sbr.rel (0) target = $region17
  $region16: #{_lambda_.2} parent=0 // pred_region
    _
  $region17: #{_lambda_.2} parent=0 // pred_fallthru
    _
  // Predicated region
  $region18: #{_lambda_.2} parent=0 // pred_check
    _
  $region19: #{_lambda_.2} parent=0 // pred_check_branch
    %21 = sbr.rel (0) target = $region21
  $region20: #{_lambda_.2} parent=0 // pred_region
    _
  $region21: #{_lambda_.2} parent=0 // pred_fallthru
    _
  // Predicated region
  $region22: #{_lambda_.2} parent=0 // pred_check
    _
  $region23: #{_lambda_.2} parent=0 // pred_check_branch
    %23 = sbr.rel (0) target = $region25
  $region24: #{_lambda_.2} parent=0 // pred_region
    _
  $region25: #{_lambda_.2} parent=0 // pred_fallthru
    _
  // Predicated region
  $region26: #{_lambda_.2} parent=0 // pred_check
    _
  $region27: #{_lambda_.2} parent=0 // pred_check_branch
    %25 = sbr.rel (0) target = $region29
  $region28: #{_lambda_.2} parent=0 // pred_region
    _
  $region29: #{_lambda_.2} parent=0 // pred_fallthru
    _
  %v26 = vld [vmem:[%s0] sm:$0xff]
  %v27 = vld [vmem:[%s0 + $0x8] sm:$0xff]
  %v28 = vld [vmem:[%s0 + $0x10] sm:$0xff]
  %v29 = vld [vmem:[%s0 + $0x18] sm:$0xff]
  %v30 = vld [vmem:[%s0 + $0x20] sm:$0xff]
  %v31 = vld [vmem:[%s0 + $0x28] sm:$0xff]
  %v32 = vld [vmem:[%s0 + $0x30] sm:$0xff]
  %v33 = vld [vmem:[%s0 + $0x38] sm:$0xff]
  %v34 = vld [vmem:[%s0 + $0x40] sm:$0xff]
  %v35 = vld [vmem:[%s0 + $0x48] sm:$0xff]
  %v36 = vld [vmem:[%s0 + $0x50] sm:$0xff]
  %v37 = vld [vmem:[%s0 + $0x58] sm:$0xff]
  %v38 = vld [vmem:[%s0 + $0x60] sm:$0xff]
  %v39 = vld [vmem:[%s0 + $0x68] sm:$0xff]
  %v40 = vld [vmem:[%s0 + $0x70] sm:$0xff]
  %v41 = vld [vmem:[%s0 + $0x78] sm:$0xff]
  %v42 = vld [vmem:[%s0 + $0x80] sm:$0xff]
  %v43 = vld [vmem:[%s0 + $0x88] sm:$0xff]
  %v44 = vld [vmem:[%s0 + $0x90] sm:$0xff]
  %v45 = vld [vmem:[%s0 + $0x98] sm:$0xff]
  %v46 = vld [vmem:[%s0 + $0xa0] sm:$0xff]
  %v47 = vld [vmem:[%s0 + $0xa8] sm:$0xff]
  %v48 = vld [vmem:[%s0 + $0xb0] sm:$0xff]
  %v49 = vld [vmem:[%s0 + $0xb8] sm:$0xff]
  %v50 = vld [vmem:[%s0 + $0xc0] sm:$0xff]
  %v51 = vld [vmem:[%s0 + $0xc8] sm:$0xff]
  %v52 = vld [vmem:[%s0 + $0xd0] sm:$0xff]
  %v53 = vld [vmem:[%s0 + $0xd8] sm:$0xff]
  %v54 = vld [vmem:[%s0 + $0xe0] sm:$0xff]
  %v55 = vld [vmem:[%s0 + $0xe8] sm:$0xff]
  %v56 = vld [vmem:[%s0 + $0xf0] sm:$0xff]
  %v57 = vld [vmem:[%s0 + $0xf8] sm:$0xff]
  %v58 = vld [vmem:[%s1] sm:$0xf]
  %v59 = vld [vmem:[%s2] sm:$0x1]
  %v61 = vperm.slane %v59, 0
  %vm63 = vcmask 31744
  %v65 = vsel %vm63, %v26, 0
  %v68 = vsel %vm63, %v27, 0
  %v71 = vsel %vm63, %v28, 0
  %v74 = vsel %vm63, %v29, 0
  %v77 = vsel %vm63, %v30, 0
  %v80 = vsel %vm63, %v31, 0
  %v83 = vsel %vm63, %v32, 0
  %v86 = vsel %vm63, %v33, 0
  %v89 = vsel %vm63, %v34, 0
  %v92 = vsel %vm63, %v35, 0
  %v95 = vsel %vm63, %v36, 0
  %v98 = vsel %vm63, %v37, 0
  %v101 = vsel %vm63, %v38, 0
  %v104 = vsel %vm63, %v39, 0
  %v107 = vsel %vm63, %v40, 0
  %v110 = vsel %vm63, %v41, 0
  %v113 = vsel %vm63, %v42, 0
  %v116 = vsel %vm63, %v43, 0
  %v119 = vsel %vm63, %v44, 0
  %v122 = vsel %vm63, %v45, 0
  %v125 = vsel %vm63, %v46, 0
  %v128 = vsel %vm63, %v47, 0
  %v131 = vsel %vm63, %v48, 0
  %v134 = vsel %vm63, %v49, 0
  %v137 = vsel %vm63, %v50, 0
  %v140 = vsel %vm63, %v51, 0
  %v143 = vsel %vm63, %v52, 0
  %v146 = vsel %vm63, %v53, 0
  %v149 = vsel %vm63, %v54, 0
  %v152 = vsel %vm63, %v55, 0
  %v155 = vsel %vm63, %v56, 0
  %v158 = vsel %vm63, %v57, 0
  %vm160 = vcmask 1043456
  %v162 = vsel %vm160, %v58, 0
  %164 = vmatpush.msra.mxu0 0.0
  %165 = vmatpush.msra.mxu0 0.0
  %166 = vmatpush.msra.mxu0 0.0
  %167 = vmatpush.msra.mxu0 0.0
  %168 = vmatpush.msra.mxu0 0.0
  %169 = vmatpush.msra.mxu0 0.0
  %170 = vmatpush.msra.mxu0 0.0
  %171 = vmatpush.msra.mxu0 0.0
  %172 = vmatpush.msra.mxu0 0.0
  %173 = vmatpush.msra.mxu0 0.0
  %174 = vmatpush.msra.mxu0 0.0
  %175 = vmatpush.msra.mxu0 0.0
  %176 = vmatpush.msra.mxu0 0.0
  %177 = vmatpush.msra.mxu0 0.0
  %178 = vmatpush.msra.mxu0 0.0
  %179 = vmatpush.msra.mxu0 %v162
  %180 = vmatmul.f32.gmra.mxu0 %v65
  %v181 = vpop.f32.mrf.mxu0
  %v182 = vadd.f32 %v61, %v181
  %183 = vmatmul.f32.gmra.mxu0 %v68
  %v184 = vpop.f32.mrf.mxu0
  %v185 = vadd.f32 %v61, %v184
  %186 = vmatmul.f32.gmra.mxu0 %v71
  %v187 = vpop.f32.mrf.mxu0
  %v188 = vadd.f32 %v61, %v187
  %189 = vmatmul.f32.gmra.mxu0 %v74
  %v190 = vpop.f32.mrf.mxu0
  %v191 = vadd.f32 %v61, %v190
  %192 = vmatmul.f32.gmra.mxu0 %v77
  %v193 = vpop.f32.mrf.mxu0
  %v194 = vadd.f32 %v61, %v193
  %195 = vmatmul.f32.gmra.mxu0 %v80
  %v196 = vpop.f32.mrf.mxu0
  %v197 = vadd.f32 %v61, %v196
  %198 = vmatmul.f32.gmra.mxu0 %v83
  %v199 = vpop.f32.mrf.mxu0
  %v200 = vadd.f32 %v61, %v199
  %201 = vmatmul.f32.gmra.mxu0 %v86
  %v202 = vpop.f32.mrf.mxu0
  %v203 = vadd.f32 %v61, %v202
  %204 = vmatmul.f32.gmra.mxu0 %v89
  %v205 = vpop.f32.mrf.mxu0
  %v206 = vadd.f32 %v61, %v205
  %207 = vmatmul.f32.gmra.mxu0 %v92
  %v208 = vpop.f32.mrf.mxu0
  %v209 = vadd.f32 %v61, %v208
  %210 = vmatmul.f32.gmra.mxu0 %v95
  %v211 = vpop.f32.mrf.mxu0
  %v212 = vadd.f32 %v61, %v211
  %213 = vmatmul.f32.gmra.mxu0 %v98
  %v214 = vpop.f32.mrf.mxu0
  %v215 = vadd.f32 %v61, %v214
  %216 = vmatmul.f32.gmra.mxu0 %v101
  %v217 = vpop.f32.mrf.mxu0
  %v218 = vadd.f32 %v61, %v217
  %219 = vmatmul.f32.gmra.mxu0 %v104
  %v220 = vpop.f32.mrf.mxu0
  %v221 = vadd.f32 %v61, %v220
  %222 = vmatmul.f32.gmra.mxu0 %v107
  %v223 = vpop.f32.mrf.mxu0
  %v224 = vadd.f32 %v61, %v223
  %225 = vmatmul.f32.gmra.mxu0 %v110
  %v226 = vpop.f32.mrf.mxu0
  %v227 = vadd.f32 %v61, %v226
  %228 = vmatmul.f32.gmra.mxu0 %v113
  %v229 = vpop.f32.mrf.mxu0
  %v230 = vadd.f32 %v61, %v229
  %231 = vmatmul.f32.gmra.mxu0 %v116
  %v232 = vpop.f32.mrf.mxu0
  %v233 = vadd.f32 %v61, %v232
  %234 = vmatmul.f32.gmra.mxu0 %v119
  %v235 = vpop.f32.mrf.mxu0
  %v236 = vadd.f32 %v61, %v235
  %237 = vmatmul.f32.gmra.mxu0 %v122
  %v238 = vpop.f32.mrf.mxu0
  %v239 = vadd.f32 %v61, %v238
  %240 = vmatmul.f32.gmra.mxu0 %v125
  %v241 = vpop.f32.mrf.mxu0
  %v242 = vadd.f32 %v61, %v241
  %243 = vmatmul.f32.gmra.mxu0 %v128
  %v244 = vpop.f32.mrf.mxu0
  %v245 = vadd.f32 %v61, %v244
  %246 = vmatmul.f32.gmra.mxu0 %v131
  %v247 = vpop.f32.mrf.mxu0
  %v248 = vadd.f32 %v61, %v247
  %249 = vmatmul.f32.gmra.mxu0 %v134
  %v250 = vpop.f32.mrf.mxu0
  %v251 = vadd.f32 %v61, %v250
  %252 = vmatmul.f32.gmra.mxu0 %v137
  %v253 = vpop.f32.mrf.mxu0
  %v254 = vadd.f32 %v61, %v253
  %255 = vmatmul.f32.gmra.mxu0 %v140
  %v256 = vpop.f32.mrf.mxu0
  %v257 = vadd.f32 %v61, %v256
  %258 = vmatmul.f32.gmra.mxu0 %v143
  %v259 = vpop.f32.mrf.mxu0
  %v260 = vadd.f32 %v61, %v259
  %261 = vmatmul.f32.gmra.mxu0 %v146
  %v262 = vpop.f32.mrf.mxu0
  %v263 = vadd.f32 %v61, %v262
  %264 = vmatmul.f32.gmra.mxu0 %v149
  %v265 = vpop.f32.mrf.mxu0
  %v266 = vadd.f32 %v61, %v265
  %267 = vmatmul.f32.gmra.mxu0 %v152
  %v268 = vpop.f32.mrf.mxu0
  %v269 = vadd.f32 %v61, %v268
  %270 = vmatmul.f32.gmra.mxu0 %v155
  %v271 = vpop.f32.mrf.mxu0
  %v272 = vadd.f32 %v61, %v271
  %273 = vmatmul.f32.gmra.mxu0 %v158
  %v274 = vpop.f32.mrf.mxu0
  %v275 = vadd.f32 %v61, %v274
  %276 = vdwg.mxu0
  %vm277 = vcmp.ge.f32.partialorder %v182, 0.0
  %vm278 = vcmp.ge.f32.partialorder %v185, 0.0
  %vm279 = vcmp.ge.f32.partialorder %v188, 0.0
  %vm280 = vcmp.ge.f32.partialorder %v191, 0.0
  %vm281 = vcmp.ge.f32.partialorder %v194, 0.0
  %vm282 = vcmp.ge.f32.partialorder %v197, 0.0
  %vm283 = vcmp.ge.f32.partialorder %v200, 0.0
  %vm284 = vcmp.ge.f32.partialorder %v203, 0.0
  %vm285 = vcmp.ge.f32.partialorder %v206, 0.0
  %vm286 = vcmp.ge.f32.partialorder %v209, 0.0
  %vm287 = vcmp.ge.f32.partialorder %v212, 0.0
  %vm288 = vcmp.ge.f32.partialorder %v215, 0.0
  %vm289 = vcmp.ge.f32.partialorder %v218, 0.0
  %vm290 = vcmp.ge.f32.partialorder %v221, 0.0
  %vm291 = vcmp.ge.f32.partialorder %v224, 0.0
  %vm292 = vcmp.ge.f32.partialorder %v227, 0.0
  %vm293 = vcmp.ge.f32.partialorder %v230, 0.0
  %vm294 = vcmp.ge.f32.partialorder %v233, 0.0
  %vm295 = vcmp.ge.f32.partialorder %v236, 0.0
  %vm296 = vcmp.ge.f32.partialorder %v239, 0.0
  %vm297 = vcmp.ge.f32.partialorder %v242, 0.0
  %vm298 = vcmp.ge.f32.partialorder %v245, 0.0
  %vm299 = vcmp.ge.f32.partialorder %v248, 0.0
  %vm300 = vcmp.ge.f32.partialorder %v251, 0.0
  %vm301 = vcmp.ge.f32.partialorder %v254, 0.0
  %vm302 = vcmp.ge.f32.partialorder %v257, 0.0
  %vm303 = vcmp.ge.f32.partialorder %v260, 0.0
  %vm304 = vcmp.ge.f32.partialorder %v263, 0.0
  %vm305 = vcmp.ge.f32.partialorder %v266, 0.0
  %vm306 = vcmp.ge.f32.partialorder %v269, 0.0
  %vm307 = vcmp.ge.f32.partialorder %v272, 0.0
  %vm308 = vcmp.ge.f32.partialorder %v275, 0.0
  %v309 = vmul.f32 %v182, 0.01
  %v310 = vmul.f32 %v185, 0.01
  %v311 = vmul.f32 %v188, 0.01
  %v312 = vmul.f32 %v191, 0.01
  %v313 = vmul.f32 %v194, 0.01
  %v314 = vmul.f32 %v197, 0.01
  %v315 = vmul.f32 %v200, 0.01
  %v316 = vmul.f32 %v203, 0.01
  %v317 = vmul.f32 %v206, 0.01
  %v318 = vmul.f32 %v209, 0.01
  %v319 = vmul.f32 %v212, 0.01
  %v320 = vmul.f32 %v215, 0.01
  %v321 = vmul.f32 %v218, 0.01
  %v322 = vmul.f32 %v221, 0.01
  %v323 = vmul.f32 %v224, 0.01
  %v324 = vmul.f32 %v227, 0.01
  %v325 = vmul.f32 %v230, 0.01
  %v326 = vmul.f32 %v233, 0.01
  %v327 = vmul.f32 %v236, 0.01
  %v328 = vmul.f32 %v239, 0.01
  %v329 = vmul.f32 %v242, 0.01
  %v330 = vmul.f32 %v245, 0.01
  %v331 = vmul.f32 %v248, 0.01
  %v332 = vmul.f32 %v251, 0.01
  %v333 = vmul.f32 %v254, 0.01
  %v334 = vmul.f32 %v257, 0.01
  %v335 = vmul.f32 %v260, 0.01
  %v336 = vmul.f32 %v263, 0.01
  %v337 = vmul.f32 %v266, 0.01
  %v338 = vmul.f32 %v269, 0.01
  %v339 = vmul.f32 %v272, 0.01
  %v340 = vmul.f32 %v275, 0.01
  %v341 = vsel %vm277, %v182, %v309
  %v342 = vsel %vm278, %v185, %v310
  %v343 = vsel %vm279, %v188, %v311
  %v344 = vsel %vm280, %v191, %v312
  %v345 = vsel %vm281, %v194, %v313
  %v346 = vsel %vm282, %v197, %v314
  %v347 = vsel %vm283, %v200, %v315
  %v348 = vsel %vm284, %v203, %v316
  %v349 = vsel %vm285, %v206, %v317
  %v350 = vsel %vm286, %v209, %v318
  %v351 = vsel %vm287, %v212, %v319
  %v352 = vsel %vm288, %v215, %v320
  %v353 = vsel %vm289, %v218, %v321
  %v354 = vsel %vm290, %v221, %v322
  %v355 = vsel %vm291, %v224, %v323
  %v356 = vsel %vm292, %v227, %v324
  %v357 = vsel %vm293, %v230, %v325
  %v358 = vsel %vm294, %v233, %v326
  %v359 = vsel %vm295, %v236, %v327
  %v360 = vsel %vm296, %v239, %v328
  %v361 = vsel %vm297, %v242, %v329
  %v362 = vsel %vm298, %v245, %v330
  %v363 = vsel %vm299, %v248, %v331
  %v364 = vsel %vm300, %v251, %v332
  %v365 = vsel %vm301, %v254, %v333
  %v366 = vsel %vm302, %v257, %v334
  %v367 = vsel %vm303, %v260, %v335
  %v368 = vsel %vm304, %v263, %v336
  %v369 = vsel %vm305, %v266, %v337
  %v370 = vsel %vm306, %v269, %v338
  %v371 = vsel %vm307, %v272, %v339
  %v372 = vsel %vm308, %v275, %v340
  %v373 = vld [vmem:[%s3] sm:$0xff]
  %v374 = vld [vmem:[%s3 + $0x8] sm:$0xff]
  %v375 = vld [vmem:[%s3 + $0x10] sm:$0xff]
  %v376 = vld [vmem:[%s3 + $0x18] sm:$0xff]
  %v377 = vld [vmem:[%s3 + $0x20] sm:$0xff]
  %v378 = vld [vmem:[%s3 + $0x28] sm:$0xff]
  %v379 = vld [vmem:[%s3 + $0x30] sm:$0xff]
  %v380 = vld [vmem:[%s3 + $0x38] sm:$0xff]
  %v381 = vld [vmem:[%s4] sm:$0x1]
  %v383 = vperm.slane %v381, 0
  %vm385 = vcmask 523264
  %v387 = vsel %vm385, %v341, 0
  %v390 = vsel %vm385, %v342, 0
  %v393 = vsel %vm385, %v343, 0
  %v396 = vsel %vm385, %v344, 0
  %v399 = vsel %vm385, %v345, 0
  %v402 = vsel %vm385, %v346, 0
  %v405 = vsel %vm385, %v347, 0
  %v408 = vsel %vm385, %v348, 0
  %v411 = vsel %vm385, %v349, 0
  %v414 = vsel %vm385, %v350, 0
  %v417 = vsel %vm385, %v351, 0
  %v420 = vsel %vm385, %v352, 0
  %v423 = vsel %vm385, %v353, 0
  %v426 = vsel %vm385, %v354, 0
  %v429 = vsel %vm385, %v355, 0
  %v432 = vsel %vm385, %v356, 0
  %v435 = vsel %vm385, %v357, 0
  %v438 = vsel %vm385, %v358, 0
  %v441 = vsel %vm385, %v359, 0
  %v444 = vsel %vm385, %v360, 0
  %v447 = vsel %vm385, %v361, 0
  %v450 = vsel %vm385, %v362, 0
  %v453 = vsel %vm385, %v363, 0
  %v456 = vsel %vm385, %v364, 0
  %v459 = vsel %vm385, %v365, 0
  %v462 = vsel %vm385, %v366, 0
  %v465 = vsel %vm385, %v367, 0
  %v468 = vsel %vm385, %v368, 0
  %v471 = vsel %vm385, %v369, 0
  %v474 = vsel %vm385, %v370, 0
  %v477 = vsel %vm385, %v371, 0
  %v480 = vsel %vm385, %v372, 0
  %482 = vmatpush.msra.mxu0 0.0
  %483 = vmatpush.msra.mxu0 0.0
  %484 = vmatpush.msra.mxu0 0.0
  %485 = vmatpush.msra.mxu0 0.0
  %486 = vmatpush.msra.mxu0 0.0
  %487 = vmatpush.msra.mxu0 0.0
  %488 = vmatpush.msra.mxu0 0.0
  %489 = vmatpush.msra.mxu0 0.0
  %490 = vmatpush.msra.mxu0 %v380
  %491 = vmatpush.msra.mxu0 %v379
  %492 = vmatpush.msra.mxu0 %v378
  %493 = vmatpush.msra.mxu0 %v377
  %494 = vmatpush.msra.mxu0 %v376
  %495 = vmatpush.msra.mxu0 %v375
  %496 = vmatpush.msra.mxu0 %v374
  %497 = vmatpush.msra.mxu0 %v373
  %498 = vmatmul.f32.gmra.mxu0 %v387
  %v499 = vpop.f32.mrf.mxu0
  %v500 = vadd.f32 %v383, %v499
  %501 = vmatmul.f32.gmra.mxu0 %v390
  %v502 = vpop.f32.mrf.mxu0
  %v503 = vadd.f32 %v383, %v502
  %504 = vmatmul.f32.gmra.mxu0 %v393
  %v505 = vpop.f32.mrf.mxu0
  %v506 = vadd.f32 %v383, %v505
  %507 = vmatmul.f32.gmra.mxu0 %v396
  %v508 = vpop.f32.mrf.mxu0
  %v509 = vadd.f32 %v383, %v508
  %510 = vmatmul.f32.gmra.mxu0 %v399
  %v511 = vpop.f32.mrf.mxu0
  %v512 = vadd.f32 %v383, %v511
  %513 = vmatmul.f32.gmra.mxu0 %v402
  %v514 = vpop.f32.mrf.mxu0
  %v515 = vadd.f32 %v383, %v514
  %516 = vmatmul.f32.gmra.mxu0 %v405
  %v517 = vpop.f32.mrf.mxu0
  %v518 = vadd.f32 %v383, %v517
  %519 = vmatmul.f32.gmra.mxu0 %v408
  %v520 = vpop.f32.mrf.mxu0
  %v521 = vadd.f32 %v383, %v520
  %522 = vmatmul.f32.gmra.mxu0 %v411
  %v523 = vpop.f32.mrf.mxu0
  %v524 = vadd.f32 %v383, %v523
  %525 = vmatmul.f32.gmra.mxu0 %v414
  %v526 = vpop.f32.mrf.mxu0
  %v527 = vadd.f32 %v383, %v526
  %528 = vmatmul.f32.gmra.mxu0 %v417
  %v529 = vpop.f32.mrf.mxu0
  %v530 = vadd.f32 %v383, %v529
  %531 = vmatmul.f32.gmra.mxu0 %v420
  %v532 = vpop.f32.mrf.mxu0
  %v533 = vadd.f32 %v383, %v532
  %534 = vmatmul.f32.gmra.mxu0 %v423
  %v535 = vpop.f32.mrf.mxu0
  %v536 = vadd.f32 %v383, %v535
  %537 = vmatmul.f32.gmra.mxu0 %v426
  %v538 = vpop.f32.mrf.mxu0
  %v539 = vadd.f32 %v383, %v538
  %540 = vmatmul.f32.gmra.mxu0 %v429
  %v541 = vpop.f32.mrf.mxu0
  %v542 = vadd.f32 %v383, %v541
  %543 = vmatmul.f32.gmra.mxu0 %v432
  %v544 = vpop.f32.mrf.mxu0
  %v545 = vadd.f32 %v383, %v544
  %546 = vmatmul.f32.gmra.mxu0 %v435
  %v547 = vpop.f32.mrf.mxu0
  %v548 = vadd.f32 %v383, %v547
  %549 = vmatmul.f32.gmra.mxu0 %v438
  %v550 = vpop.f32.mrf.mxu0
  %v551 = vadd.f32 %v383, %v550
  %552 = vmatmul.f32.gmra.mxu0 %v441
  %v553 = vpop.f32.mrf.mxu0
  %v554 = vadd.f32 %v383, %v553
  %555 = vmatmul.f32.gmra.mxu0 %v444
  %v556 = vpop.f32.mrf.mxu0
  %v557 = vadd.f32 %v383, %v556
  %558 = vmatmul.f32.gmra.mxu0 %v447
  %v559 = vpop.f32.mrf.mxu0
  %v560 = vadd.f32 %v383, %v559
  %561 = vmatmul.f32.gmra.mxu0 %v450
  %v562 = vpop.f32.mrf.mxu0
  %v563 = vadd.f32 %v383, %v562
  %564 = vmatmul.f32.gmra.mxu0 %v453
  %v565 = vpop.f32.mrf.mxu0
  %v566 = vadd.f32 %v383, %v565
  %567 = vmatmul.f32.gmra.mxu0 %v456
  %v568 = vpop.f32.mrf.mxu0
  %v569 = vadd.f32 %v383, %v568
  %570 = vmatmul.f32.gmra.mxu0 %v459
  %v571 = vpop.f32.mrf.mxu0
  %v572 = vadd.f32 %v383, %v571
  %573 = vmatmul.f32.gmra.mxu0 %v462
  %v574 = vpop.f32.mrf.mxu0
  %v575 = vadd.f32 %v383, %v574
  %576 = vmatmul.f32.gmra.mxu0 %v465
  %v577 = vpop.f32.mrf.mxu0
  %v578 = vadd.f32 %v383, %v577
  %579 = vmatmul.f32.gmra.mxu0 %v468
  %v580 = vpop.f32.mrf.mxu0
  %v581 = vadd.f32 %v383, %v580
  %582 = vmatmul.f32.gmra.mxu0 %v471
  %v583 = vpop.f32.mrf.mxu0
  %v584 = vadd.f32 %v383, %v583
  %585 = vmatmul.f32.gmra.mxu0 %v474
  %v586 = vpop.f32.mrf.mxu0
  %v587 = vadd.f32 %v383, %v586
  %588 = vmatmul.f32.gmra.mxu0 %v477
  %v589 = vpop.f32.mrf.mxu0
  %v590 = vadd.f32 %v383, %v589
  %591 = vmatmul.f32.gmra.mxu0 %v480
  %v592 = vpop.f32.mrf.mxu0
  %v593 = vadd.f32 %v383, %v592
  %594 = vdwg.mxu0
  %vm595 = vcmp.ge.f32.partialorder %v500, 0.0
  %vm596 = vcmp.ge.f32.partialorder %v503, 0.0
  %vm597 = vcmp.ge.f32.partialorder %v506, 0.0
  %vm598 = vcmp.ge.f32.partialorder %v509, 0.0
  %vm599 = vcmp.ge.f32.partialorder %v512, 0.0
  %vm600 = vcmp.ge.f32.partialorder %v515, 0.0
  %vm601 = vcmp.ge.f32.partialorder %v518, 0.0
  %vm602 = vcmp.ge.f32.partialorder %v521, 0.0
  %vm603 = vcmp.ge.f32.partialorder %v524, 0.0
  %vm604 = vcmp.ge.f32.partialorder %v527, 0.0
  %vm605 = vcmp.ge.f32.partialorder %v530, 0.0
  %vm606 = vcmp.ge.f32.partialorder %v533, 0.0
  %vm607 = vcmp.ge.f32.partialorder %v536, 0.0
  %vm608 = vcmp.ge.f32.partialorder %v539, 0.0
  %vm609 = vcmp.ge.f32.partialorder %v542, 0.0
  %vm610 = vcmp.ge.f32.partialorder %v545, 0.0
  %vm611 = vcmp.ge.f32.partialorder %v548, 0.0
  %vm612 = vcmp.ge.f32.partialorder %v551, 0.0
  %vm613 = vcmp.ge.f32.partialorder %v554, 0.0
  %vm614 = vcmp.ge.f32.partialorder %v557, 0.0
  %vm615 = vcmp.ge.f32.partialorder %v560, 0.0
  %vm616 = vcmp.ge.f32.partialorder %v563, 0.0
  %vm617 = vcmp.ge.f32.partialorder %v566, 0.0
  %vm618 = vcmp.ge.f32.partialorder %v569, 0.0
  %vm619 = vcmp.ge.f32.partialorder %v572, 0.0
  %vm620 = vcmp.ge.f32.partialorder %v575, 0.0
  %vm621 = vcmp.ge.f32.partialorder %v578, 0.0
  %vm622 = vcmp.ge.f32.partialorder %v581, 0.0
  %vm623 = vcmp.ge.f32.partialorder %v584, 0.0
  %vm624 = vcmp.ge.f32.partialorder %v587, 0.0
  %vm625 = vcmp.ge.f32.partialorder %v590, 0.0
  %vm626 = vcmp.ge.f32.partialorder %v593, 0.0
  %v627 = vmul.f32 %v500, 0.01
  %v628 = vmul.f32 %v503, 0.01
  %v629 = vmul.f32 %v506, 0.01
  %v630 = vmul.f32 %v509, 0.01
  %v631 = vmul.f32 %v512, 0.01
  %v632 = vmul.f32 %v515, 0.01
  %v633 = vmul.f32 %v518, 0.01
  %v634 = vmul.f32 %v521, 0.01
  %v635 = vmul.f32 %v524, 0.01
  %v636 = vmul.f32 %v527, 0.01
  %v637 = vmul.f32 %v530, 0.01
  %v638 = vmul.f32 %v533, 0.01
  %v639 = vmul.f32 %v536, 0.01
  %v640 = vmul.f32 %v539, 0.01
  %v641 = vmul.f32 %v542, 0.01
  %v642 = vmul.f32 %v545, 0.01
  %v643 = vmul.f32 %v548, 0.01
  %v644 = vmul.f32 %v551, 0.01
  %v645 = vmul.f32 %v554, 0.01
  %v646 = vmul.f32 %v557, 0.01
  %v647 = vmul.f32 %v560, 0.01
  %v648 = vmul.f32 %v563, 0.01
  %v649 = vmul.f32 %v566, 0.01
  %v650 = vmul.f32 %v569, 0.01
  %v651 = vmul.f32 %v572, 0.01
  %v652 = vmul.f32 %v575, 0.01
  %v653 = vmul.f32 %v578, 0.01
  %v654 = vmul.f32 %v581, 0.01
  %v655 = vmul.f32 %v584, 0.01
  %v656 = vmul.f32 %v587, 0.01
  %v657 = vmul.f32 %v590, 0.01
  %v658 = vmul.f32 %v593, 0.01
  %v659 = vsel %vm595, %v500, %v627
  %v660 = vsel %vm596, %v503, %v628
  %v661 = vsel %vm597, %v506, %v629
  %v662 = vsel %vm598, %v509, %v630
  %v663 = vsel %vm599, %v512, %v631
  %v664 = vsel %vm600, %v515, %v632
  %v665 = vsel %vm601, %v518, %v633
  %v666 = vsel %vm602, %v521, %v634
  %v667 = vsel %vm603, %v524, %v635
  %v668 = vsel %vm604, %v527, %v636
  %v669 = vsel %vm605, %v530, %v637
  %v670 = vsel %vm606, %v533, %v638
  %v671 = vsel %vm607, %v536, %v639
  %v672 = vsel %vm608, %v539, %v640
  %v673 = vsel %vm609, %v542, %v641
  %v674 = vsel %vm610, %v545, %v642
  %v675 = vsel %vm611, %v548, %v643
  %v676 = vsel %vm612, %v551, %v644
  %v677 = vsel %vm613, %v554, %v645
  %v678 = vsel %vm614, %v557, %v646
  %v679 = vsel %vm615, %v560, %v647
  %v680 = vsel %vm616, %v563, %v648
  %v681 = vsel %vm617, %v566, %v649
  %v682 = vsel %vm618, %v569, %v650
  %v683 = vsel %vm619, %v572, %v651
  %v684 = vsel %vm620, %v575, %v652
  %v685 = vsel %vm621, %v578, %v653
  %v686 = vsel %vm622, %v581, %v654
  %v687 = vsel %vm623, %v584, %v655
  %v688 = vsel %vm624, %v587, %v656
  %v689 = vsel %vm625, %v590, %v657
  %v690 = vsel %vm626, %v593, %v658
  %v691 = vld [vmem:[%s5] sm:$0x3]
  %v692 = vld [vmem:[%s6] sm:$0x3]
  %694 = vset.pattern.permute.xlu0 0
  %695 = vperm.xlu0 %694, %v692
  %v696 = vpop.permute.xlu0 %695
  %698 = vmatpush.xpose.msra.mxu0 %v674
  %699 = vmatpush.xpose.msra.mxu0 %v673
  %700 = vmatpush.xpose.msra.mxu0 %v672
  %701 = vmatpush.xpose.msra.mxu0 %v671
  %702 = vmatpush.xpose.msra.mxu0 %v670
  %703 = vmatpush.xpose.msra.mxu0 %v669
  %704 = vmatpush.xpose.msra.mxu0 %v668
  %705 = vmatpush.xpose.msra.mxu0 %v667
  %706 = vmatpush.xpose.msra.mxu0 %v666
  %707 = vmatpush.xpose.msra.mxu0 %v665
  %708 = vmatpush.xpose.msra.mxu0 %v664
  %709 = vmatpush.xpose.msra.mxu0 %v663
  %710 = vmatpush.xpose.msra.mxu0 %v662
  %711 = vmatpush.xpose.msra.mxu0 %v661
  %712 = vmatpush.xpose.msra.mxu0 %v660
  %713 = vmatpush.xpose.msra.mxu0 %v659
  %714 = vmatmul.f32.gmra.mxu0 %v691
  %v715 = vpop.f32.mrf.mxu0
  %v716 = vadd.f32 %v696, %v715
  %717 = vdwg.mxu0
  %718 = vmatpush.xpose.msra.mxu0 %v690
  %719 = vmatpush.xpose.msra.mxu0 %v689
  %720 = vmatpush.xpose.msra.mxu0 %v688
  %721 = vmatpush.xpose.msra.mxu0 %v687
  %722 = vmatpush.xpose.msra.mxu0 %v686
  %723 = vmatpush.xpose.msra.mxu0 %v685
  %724 = vmatpush.xpose.msra.mxu0 %v684
  %725 = vmatpush.xpose.msra.mxu0 %v683
  %726 = vmatpush.xpose.msra.mxu0 %v682
  %727 = vmatpush.xpose.msra.mxu0 %v681
  %728 = vmatpush.xpose.msra.mxu0 %v680
  %729 = vmatpush.xpose.msra.mxu0 %v679
  %730 = vmatpush.xpose.msra.mxu0 %v678
  %731 = vmatpush.xpose.msra.mxu0 %v677
  %732 = vmatpush.xpose.msra.mxu0 %v676
  %733 = vmatpush.xpose.msra.mxu0 %v675
  %734 = vmatmul.f32.gmra.mxu0 %v691
  %v735 = vpop.f32.mrf.mxu0
  %v736 = vadd.f32 %v696, %v735
  %737 = vdwg.mxu0
  %v740 = vrot.slane %v736, 6
  %vm741 = vcmask 1041408
  %v742 = vsel %vm741, %v716, %v740
  %744 = vst [vmem:[%s7] sm:$0xf] %v742
  // Predicated region
  $region30: #{_lambda_.2} parent=0 // pred_check
    _
  $region31: #{_lambda_.2} parent=0 // pred_check_branch
    %746 = sbr.rel (0) target = $region33
  $region32: #{_lambda_.2} parent=0 // pred_region
    _
  $region33: #{_lambda_.2} parent=0 // pred_fallthru
    _
  // Predicated region
  $region34: #{_lambda_.2} parent=0 // pred_check
    _
  $region35: #{_lambda_.2} parent=0 // pred_check_branch
    %748 = sbr.rel (0) target = $region37
  $region36: #{_lambda_.2} parent=0 // pred_region
    _
  $region37: #{_lambda_.2} parent=0 // pred_fallthru
    _

// kernel: _lambda_.3
$region0: #{_lambda_.3}
  #allocation0 [shape = 'u32[]', space=smem, size = 0x4, offset = 0x4, fixed_abs, tag = 'smem constant byte address 0x4 - core index']
  #allocation1 [shape = 'u32[72,128]{1,0:T(1,128)}', space=vmem, size = 0x9000, scoped, tag = 'internal scratch']
  %s0 = inlined_call_operand.vmem [shape: f32[2,32,8], index: 0, kind: input, shape index: {}]
  %s1 = inlined_call_operand.vmem [shape: f32[3,8,64], index: 1, kind: input, shape index: {}]
  %s2 = inlined_call_operand.vmem [shape: f32[3,1,64], index: 2, kind: input, shape index: {}]
  %s3 = inlined_call_operand.vmem [shape: f32[32,8], index: 3, kind: input, shape index: {}]
  %s4 = inlined_call_operand.vmem [shape: f32[32,8], index: 4, kind: input, shape index: {}]
  %s5 = inlined_call_operand.vmem [shape: f32[2,1,8], index: 5, kind: input, shape index: {}]
  %s6 = inlined_call_operand.vmem [shape: f32[2,1,8], index: 6, kind: input, shape index: {}]
  %s7 = inlined_call_operand.vmem [shape: f32[16,32], index: 7, kind: input, shape index: {}]
  %s8 = inlined_call_operand.vmem [shape: f32[2,16,8], index: 8, kind: output, shape index: {}]
  %s9 = sld [smem:[#allocation0]]
  $region65: #{_lambda_.3} parent=0
    _
  %s11 = ssub.s32 1, %s9
  %s12 = scalar_select 0, %s11, %s9
  loop: start=0, step=1, limit=4
  $region2: #{_lambda_.3} parent=0 // loop_pre_header
    _
  $region3: #{_lambda_.3} parent=0 // loop_header
    %s14 = sphi 0, %s18
    %p15 = scmp.ge.s32.totalorder %s14, 4
    %s24 = sphi 0, %s26
    %s27 = sphi 0, %s24
    %s28 = sphi 0, %s27
    %s44 = sphi 0, %s28
    %s48 = sphi 0, %s48
    %s50 = sphi 0, %s48
    %s51 = sphi 0, %s50
    %s65 = sphi 0, %s51
    %s69 = sphi 0, %s69
    %s71 = sphi 0, %s69
    %s72 = sphi 0, %s71
    %s86 = sphi 0, %s72
    %s90 = sphi 0, %s90
    %s92 = sphi 0, %s90
    %s93 = sphi 0, %s92
    %s107 = sphi 0, %s93
    %s111 = sphi 0, %s111
    %s113 = sphi 0, %s111
    %s114 = sphi 0, %s113
    %s128 = sphi 0, %s114
    %s132 = sphi 0, %s132
    %s134 = sphi 0, %s132
    %s135 = sphi 0, %s134
    %s149 = sphi 0, %s135
    %s153 = sphi 0, %s153
    %s155 = sphi 0, %s153
    %s156 = sphi 0, %s155
    %s170 = sphi 0, %s156
    %s174 = sphi 0, %s174
    %s176 = sphi 0, %s174
    %s177 = sphi 0, %s176
    %s191 = sphi 0, %s177
    %s197 = sphi 0, %s199
    %s200 = sphi 0, %s197
    %s201 = sphi 0, %s200
    %s217 = sphi 0, %s201
  $region4: #{_lambda_.3} parent=0 // loop_header_branch
    %17 = sbr.rel (%p15) target = $region8
  $region5: #{_lambda_.3} parent=0 // loop_body
    %s19 = ssub.s32 %s14, 1
    %s20 = ssub.s32 %s14, 2
    %s21 = sadd.s32 %s14, 1
    %s22 = ssub.s32 %s14, %s21
    %p23 = scmp.eq.s32.totalorder %s22, 0
    %s25 = sadd.s32 %s24, 1
    %s26 = scalar_select %p23, %s24, %s25
    %p29 = pneg %p23
    %p30 = scmp.eq.s32.totalorder %s14, 1
    %p31 = por %p29, %p30
    %p32 = scmp.ne.s32.totalorder %s24, %s27
    %p33 = scmp.eq.s32.totalorder %s14, 0
    %p34 = por %p32, %p33
    %p35 = scmp.ne.s32.totalorder %s24, %s27
    %p36 = scmp.eq.s32.totalorder %s19, 1
    %p37 = por %p35, %p36
    %p38 = scmp.ne.s32.totalorder %s27, %s28
    %p39 = scmp.eq.s32.totalorder %s19, 0
    %p40 = por %p38, %p39
    %p41 = scmp.ne.s32.totalorder %s27, %s28
    %p42 = scmp.eq.s32.totalorder %s20, 1
    %p43 = por %p41, %p42
    %p45 = scmp.ne.s32.totalorder %s28, %s44
    %p46 = scmp.eq.s32.totalorder %s20, 0
    %p47 = por %p45, %p46
    %s49 = sadd.s32 %s48, 1
    %p52 = scmp.eq.s32.totalorder %s14, 1
    %p53 = scmp.ne.s32.totalorder %s48, %s50
    %p54 = scmp.eq.s32.totalorder %s14, 0
    %p55 = por %p53, %p54
    %p56 = scmp.ne.s32.totalorder %s48, %s50
    %p57 = scmp.eq.s32.totalorder %s19, 1
    %p58 = por %p56, %p57
    %p59 = scmp.ne.s32.totalorder %s50, %s51
    %p60 = scmp.eq.s32.totalorder %s19, 0
    %p61 = por %p59, %p60
    %p62 = scmp.ne.s32.totalorder %s50, %s51
    %p63 = scmp.eq.s32.totalorder %s20, 1
    %p64 = por %p62, %p63
    %p66 = scmp.ne.s32.totalorder %s51, %s65
    %p67 = scmp.eq.s32.totalorder %s20, 0
    %p68 = por %p66, %p67
    %s70 = sadd.s32 %s69, 1
    %p73 = scmp.eq.s32.totalorder %s14, 1
    %p74 = scmp.ne.s32.totalorder %s69, %s71
    %p75 = scmp.eq.s32.totalorder %s14, 0
    %p76 = por %p74, %p75
    %p77 = scmp.ne.s32.totalorder %s69, %s71
    %p78 = scmp.eq.s32.totalorder %s19, 1
    %p79 = por %p77, %p78
    %p80 = scmp.ne.s32.totalorder %s71, %s72
    %p81 = scmp.eq.s32.totalorder %s19, 0
    %p82 = por %p80, %p81
    %p83 = scmp.ne.s32.totalorder %s71, %s72
    %p84 = scmp.eq.s32.totalorder %s20, 1
    %p85 = por %p83, %p84
    %p87 = scmp.ne.s32.totalorder %s72, %s86
    %p88 = scmp.eq.s32.totalorder %s20, 0
    %p89 = por %p87, %p88
    %s91 = sadd.s32 %s90, 1
    %p94 = scmp.eq.s32.totalorder %s14, 1
    %p95 = scmp.ne.s32.totalorder %s90, %s92
    %p96 = scmp.eq.s32.totalorder %s14, 0
    %p97 = por %p95, %p96
    %p98 = scmp.ne.s32.totalorder %s90, %s92
    %p99 = scmp.eq.s32.totalorder %s19, 1
    %p100 = por %p98, %p99
    %p101 = scmp.ne.s32.totalorder %s92, %s93
    %p102 = scmp.eq.s32.totalorder %s19, 0
    %p103 = por %p101, %p102
    %p104 = scmp.ne.s32.totalorder %s92, %s93
    %p105 = scmp.eq.s32.totalorder %s20, 1
    %p106 = por %p104, %p105
    %p108 = scmp.ne.s32.totalorder %s93, %s107
    %p109 = scmp.eq.s32.totalorder %s20, 0
    %p110 = por %p108, %p109
    %s112 = sadd.s32 %s111, 1
    %p115 = scmp.eq.s32.totalorder %s14, 1
    %p116 = scmp.ne.s32.totalorder %s111, %s113
    %p117 = scmp.eq.s32.totalorder %s14, 0
    %p118 = por %p116, %p117
    %p119 = scmp.ne.s32.totalorder %s111, %s113
    %p120 = scmp.eq.s32.totalorder %s19, 1
    %p121 = por %p119, %p120
    %p122 = scmp.ne.s32.totalorder %s113, %s114
    %p123 = scmp.eq.s32.totalorder %s19, 0
    %p124 = por %p122, %p123
    %p125 = scmp.ne.s32.totalorder %s113, %s114
    %p126 = scmp.eq.s32.totalorder %s20, 1
    %p127 = por %p125, %p126
    %p129 = scmp.ne.s32.totalorder %s114, %s128
    %p130 = scmp.eq.s32.totalorder %s20, 0
    %p131 = por %p129, %p130
    %s133 = sadd.s32 %s132, 1
    %p136 = scmp.eq.s32.totalorder %s14, 1
    %p137 = scmp.ne.s32.totalorder %s132, %s134
    %p138 = scmp.eq.s32.totalorder %s14, 0
    %p139 = por %p137, %p138
    %p140 = scmp.ne.s32.totalorder %s132, %s134
    %p141 = scmp.eq.s32.totalorder %s19, 1
    %p142 = por %p140, %p141
    %p143 = scmp.ne.s32.totalorder %s134, %s135
    %p144 = scmp.eq.s32.totalorder %s19, 0
    %p145 = por %p143, %p144
    %p146 = scmp.ne.s32.totalorder %s134, %s135
    %p147 = scmp.eq.s32.totalorder %s20, 1
    %p148 = por %p146, %p147
    %p150 = scmp.ne.s32.totalorder %s135, %s149
    %p151 = scmp.eq.s32.totalorder %s20, 0
    %p152 = por %p150, %p151
    %s154 = sadd.s32 %s153, 1
    %p157 = scmp.eq.s32.totalorder %s14, 1
    %p158 = scmp.ne.s32.totalorder %s153, %s155
    %p159 = scmp.eq.s32.totalorder %s14, 0
    %p160 = por %p158, %p159
    %p161 = scmp.ne.s32.totalorder %s153, %s155
    %p162 = scmp.eq.s32.totalorder %s19, 1
    %p163 = por %p161, %p162
    %p164 = scmp.ne.s32.totalorder %s155, %s156
    %p165 = scmp.eq.s32.totalorder %s19, 0
    %p166 = por %p164, %p165
    %p167 = scmp.ne.s32.totalorder %s155, %s156
    %p168 = scmp.eq.s32.totalorder %s20, 1
    %p169 = por %p167, %p168
    %p171 = scmp.ne.s32.totalorder %s156, %s170
    %p172 = scmp.eq.s32.totalorder %s20, 0
    %p173 = por %p171, %p172
    %s175 = sadd.s32 %s174, 1
    %p178 = scmp.eq.s32.totalorder %s14, 1
    %p179 = scmp.ne.s32.totalorder %s174, %s176
    %p180 = scmp.eq.s32.totalorder %s14, 0
    %p181 = por %p179, %p180
    %p182 = scmp.ne.s32.totalorder %s174, %s176
    %p183 = scmp.eq.s32.totalorder %s19, 1
    %p184 = por %p182, %p183
    %p185 = scmp.ne.s32.totalorder %s176, %s177
    %p186 = scmp.eq.s32.totalorder %s19, 0
    %p187 = por %p185, %p186
    %p188 = scmp.ne.s32.totalorder %s176, %s177
    %p189 = scmp.eq.s32.totalorder %s20, 1
    %p190 = por %p188, %p189
    %p192 = scmp.ne.s32.totalorder %s177, %s191
    %p193 = scmp.eq.s32.totalorder %s20, 0
    %p194 = por %p192, %p193
    %s195 = ssub.s32 %s14, %s21
    %p196 = scmp.eq.s32.totalorder %s195, 0
    %s198 = sadd.s32 %s197, 1
    %s199 = scalar_select %p196, %s197, %s198
    %p202 = pneg %p196
    %p203 = scmp.eq.s32.totalorder %s14, 1
    %p204 = por %p202, %p203
    %p205 = scmp.ne.s32.totalorder %s197, %s200
    %p206 = scmp.eq.s32.totalorder %s14, 0
    %p207 = por %p205, %p206
    %p208 = scmp.ne.s32.totalorder %s197, %s200
    %p209 = scmp.eq.s32.totalorder %s19, 1
    %p210 = por %p208, %p209
    %p211 = scmp.ne.s32.totalorder %s200, %s201
    %p212 = scmp.eq.s32.totalorder %s19, 0
    %p213 = por %p211, %p212
    %p214 = scmp.ne.s32.totalorder %s200, %s201
    %p215 = scmp.eq.s32.totalorder %s20, 1
    %p216 = por %p214, %p215
    %p218 = scmp.ne.s32.totalorder %s201, %s217
    %p219 = scmp.eq.s32.totalorder %s20, 0
    %p220 = por %p218, %p219
    %p221 = scmp.le.s32.totalorder 1, %s14
    %p222 = scmp.lt.s32.totalorder %s14, 3
    %p223 = pnand %p221, %p222
    %p224 = pneg %p223
    // Predicated region
    $region9: #{_lambda_.3} parent=5 // pred_check
      _
    $region10: #{_lambda_.3} parent=5 // pred_check_branch
      %226 = sbr.rel (%p223) target = $region12
    $region11: #{_lambda_.3} parent=5 // pred_region
      %s227 = ssub.s32 %s14, 1
      // Predicated region
      $region13: #{_lambda_.3} parent=11 // pred_check
        %p228 = pneg %p61
      $region14: #{_lambda_.3} parent=11 // pred_check_branch
        %230 = sbr.rel (%p228) target = $region16
      $region15: #{_lambda_.3} parent=11 // pred_region
        _
      $region16: #{_lambda_.3} parent=11 // pred_fallthru
        _
      // Predicated region
      $region17: #{_lambda_.3} parent=11 // pred_check
        %p231 = pneg %p82
      $region18: #{_lambda_.3} parent=11 // pred_check_branch
        %233 = sbr.rel (%p231) target = $region20
      $region19: #{_lambda_.3} parent=11 // pred_region
        _
      $region20: #{_lambda_.3} parent=11 // pred_fallthru
        _
      // Predicated region
      $region21: #{_lambda_.3} parent=11 // pred_check
        %p234 = pneg %p103
      $region22: #{_lambda_.3} parent=11 // pred_check_branch
        %236 = sbr.rel (%p234) target = $region24
      $region23: #{_lambda_.3} parent=11 // pred_region
        _
      $region24: #{_lambda_.3} parent=11 // pred_fallthru
        _
      // Predicated region
      $region25: #{_lambda_.3} parent=11 // pred_check
        %p237 = pneg %p124
      $region26: #{_lambda_.3} parent=11 // pred_check_branch
        %239 = sbr.rel (%p237) target = $region28
      $region27: #{_lambda_.3} parent=11 // pred_region
        _
      $region28: #{_lambda_.3} parent=11 // pred_fallthru
        _
      // Predicated region
      $region29: #{_lambda_.3} parent=11 // pred_check
        %p240 = pneg %p145
      $region30: #{_lambda_.3} parent=11 // pred_check_branch
        %242 = sbr.rel (%p240) target = $region32
      $region31: #{_lambda_.3} parent=11 // pred_region
        _
      $region32: #{_lambda_.3} parent=11 // pred_fallthru
        _
      // Predicated region
      $region33: #{_lambda_.3} parent=11 // pred_check
        %p243 = pneg %p166
      $region34: #{_lambda_.3} parent=11 // pred_check_branch
        %245 = sbr.rel (%p243) target = $region36
      $region35: #{_lambda_.3} parent=11 // pred_region
        _
      $region36: #{_lambda_.3} parent=11 // pred_fallthru
        _
      // Predicated region
      $region37: #{_lambda_.3} parent=11 // pred_check
        %p246 = pneg %p187
      $region38: #{_lambda_.3} parent=11 // pred_check_branch
        %248 = sbr.rel (%p246) target = $region40
      $region39: #{_lambda_.3} parent=11 // pred_region
        _
      $region40: #{_lambda_.3} parent=11 // pred_fallthru
        _
    $region12: #{_lambda_.3} parent=5 // pred_fallthru
      _
    %p249 = scmp.lt.s32.totalorder %s14, 2
    // Predicated region
    $region41: #{_lambda_.3} parent=5 // pred_check
      %p250 = pneg %p249
    $region42: #{_lambda_.3} parent=5 // pred_check_branch
      %252 = sbr.rel (%p250) target = $region44
    $region43: #{_lambda_.3} parent=5 // pred_region
      // Predicated region
      $region45: #{_lambda_.3} parent=43 // pred_check
        %p253 = pneg %p34
      $region46: #{_lambda_.3} parent=43 // pred_check_branch
        %255 = sbr.rel (%p253) target = $region48
      $region47: #{_lambda_.3} parent=43 // pred_region
        %p256 = scmp.lt.s32.totalorder %s14, 1
        %s257 = scalar_select %p256, %s14, 1
        %s258 = smul.addr %s257, 4
        %s259 = smul.addr %s258, 8
        %s260 = scalar_lea.vmem %s0, %s259
      $region48: #{_lambda_.3} parent=43 // pred_fallthru
        _
    $region44: #{_lambda_.3} parent=5 // pred_fallthru
      _
    %p261 = scmp.le.s32.totalorder 1, %s14
    %p262 = scmp.lt.s32.totalorder %s14, 3
    %p263 = pnand %p261, %p262
    %p264 = pneg %p263
    // Predicated region
    $region49: #{_lambda_.3} parent=5 // pred_check
      _
    $region50: #{_lambda_.3} parent=5 // pred_check_branch
      %266 = sbr.rel (%p263) target = $region52
    $region51: #{_lambda_.3} parent=5 // pred_region
      %s267 = ssub.s32 %s14, 1
      %p268 = scmp.lt.s32.totalorder %s19, 1
      %s269 = scalar_select %p268, %s19, 1
      %s270 = smul.addr %s269, 4
      %s271 = smul.addr %s270, 8
      %s272 = scalar_lea.vmem %s0, %s271
      %p273 = pneg %p40
      %p274 = pneg %p37
      %p275 = pneg %p61
      %p276 = pneg %p58
      %p277 = pneg %p82
      %p278 = pneg %p79
      %p279 = pneg %p103
      %p280 = pneg %p100
      %p281 = pneg %p124
      %p282 = pneg %p121
      %p283 = pneg %p145
      %p284 = pneg %p142
      %p285 = pneg %p166
      %p286 = pneg %p163
      %p287 = pneg %p187
      %p288 = pneg %p184
      %p289 = pneg %p213
      %p290 = pneg %p210
      %p291 = scmp.lt.s32.totalorder %s19, 1
      %s292 = scalar_select %p291, %s19, 1
      %s293 = smul.addr %s292, 2
      %s294 = smul.addr %s293, 8
      %s295 = scalar_lea.vmem %s8, %s294
      %p296 = scmp.lt.s32.totalorder %s19, 1
      %s297 = scalar_select %p296, %s19, 1
      %s298 = smul.addr %s297, 4
      %s299 = smul.addr %s298, 8
      %s300 = scalar_lea.vmem %s0, %s299
      %p301 = scmp.lt.s32.totalorder %s19, 1
      %s302 = scalar_select %p301, %s19, 1
      %s303 = smul.addr %s302, 2
      %s304 = smul.addr %s303, 8
      %s305 = scalar_lea.vmem %s8, %s304
      %v306 = vld [vmem:[%s300] sm:$0xff]
      %v307 = vld [vmem:[%s300 + $0x8] sm:$0xff]
      %v308 = vld [vmem:[%s300 + $0x10] sm:$0xff]
      %v309 = vld [vmem:[%s300 + $0x18] sm:$0xff]
      %vm310 = vcmask 64512
      %v311 = vsel %vm310, %v306, 0.0
      %v312 = vsel %vm310, %v307, 0.0
      %v313 = vadd.f32 %v311, %v312
      %v314 = vsel %vm310, %v308, 0.0
      %v315 = vadd.f32 %v313, %v314
      %v316 = vsel %vm310, %v309, 0.0
      %v317 = vadd.f32 %v315, %v316
      %318 = vadd.xlane.f32.xlu0 %v317
      %v319 = vpop.xlane.xlu0 %318
      %v320 = vrot.slane %v319, 4
      %v321 = vadd.f32 %v319, %v320
      %v322 = vrot.slane %v321, 2
      %v323 = vadd.f32 %v321, %v322
      %v324 = vrot.slane %v323, 1
      %v325 = vadd.f32 %v323, %v324
      %s326 = vtos %v325
      %v327 = vrcp.pop 256.0
      %v328 = vmul.f32 256.0, %v327
      %v329 = vsub.f32 1.0, %v328
      %v330 = vmul.f32 %v327, %v329
      %v331 = vadd.f32 %v327, %v330
      %vm332 = vweird.f32 %v327
      %v333 = vsel %vm332, %v327, %v331
      %s334 = vtos %v333
      %s335 = smul.f32 %s326, %s334
      %v336 = vstv %s335
      %v337 = vsub.f32 %v306, %v336
      %v338 = vsub.f32 %v307, %v336
      %v339 = vsub.f32 %v308, %v336
      %v340 = vsub.f32 %v309, %v336
      %v341 = vmul.f32 %v337, %v337
      %v342 = vmul.f32 %v338, %v338
      %v343 = vmul.f32 %v339, %v339
      %v344 = vmul.f32 %v340, %v340
      %v345 = vsel %vm310, %v341, 0.0
      %v346 = vsel %vm310, %v342, 0.0
      %v347 = vadd.f32 %v345, %v346
      %v348 = vsel %vm310, %v343, 0.0
      %v349 = vadd.f32 %v347, %v348
      %v350 = vsel %vm310, %v344, 0.0
      %v351 = vadd.f32 %v349, %v350
      %352 = vadd.xlane.f32.xlu0 %v351
      %v353 = vpop.xlane.xlu0 %352
      %v354 = vrot.slane %v353, 4
      %v355 = vadd.f32 %v353, %v354
      %v356 = vrot.slane %v355, 2
      %v357 = vadd.f32 %v355, %v356
      %v358 = vrot.slane %v357, 1
      %v359 = vadd.f32 %v357, %v358
      %s360 = vtos %v359
      %v361 = vrcp.pop 256.0
      %v362 = vmul.f32 256.0, %v361
      %v363 = vsub.f32 1.0, %v362
      %v364 = vmul.f32 %v361, %v363
      %v365 = vadd.f32 %v361, %v364
      %vm366 = vweird.f32 %v361
      %v367 = vsel %vm366, %v361, %v365
      %s368 = vtos %v367
      %s369 = smul.f32 %s360, %s368
      %s370 = sadd.f32 %s369, 1e-05
      %v371 = vstv %s370
      %v372 = vrsqrt.pop %v371
      %v373 = vmul.f32 %v372, %v371
      %v374 = vmul.f32 %v373, %v372
      %v375 = vmul.f32 0.5, %v374
      %v376 = vsub.f32 1.5, %v375
      %v377 = vmul.f32 %v372, %v376
      %vm378 = vweird.f32 %v371
      %vm379 = vweird.f32 %v372
      %vm380 = vmor %vm378, %vm379
      %v381 = vsel %vm380, %v372, %v377
      %s382 = vtos %v381
      %v383 = vstv %s382
      %v384 = vmul.f32 %v337, %v383
      %v385 = vmul.f32 %v338, %v383
      %v386 = vmul.f32 %v339, %v383
      %v387 = vmul.f32 %v340, %v383
      %v388 = vld [vmem:[%s3] sm:$0xff]
      %v389 = vld [vmem:[%s3 + $0x8] sm:$0xff]
      %v390 = vld [vmem:[%s3 + $0x10] sm:$0xff]
      %v391 = vld [vmem:[%s3 + $0x18] sm:$0xff]
      %v392 = vmul.f32 %v384, %v388
      %v393 = vmul.f32 %v385, %v389
      %v394 = vmul.f32 %v386, %v390
      %v395 = vmul.f32 %v387, %v391
      %v396 = vld [vmem:[%s4] sm:$0xff]
      %v397 = vld [vmem:[%s4 + $0x8] sm:$0xff]
      %v398 = vld [vmem:[%s4 + $0x10] sm:$0xff]
      %v399 = vld [vmem:[%s4 + $0x18] sm:$0xff]
      %v400 = vadd.f32 %v392, %v396
      %v401 = vadd.f32 %v393, %v397
      %v402 = vadd.f32 %v394, %v398
      %v403 = vadd.f32 %v395, %v399
      %v404 = vld [vmem:[%s1] sm:$0xff]
      %v405 = vld [vmem:[%s2] sm:$0x1]
      %v407 = vperm.slane %v405, 0
      %v410 = vsel %vm310, %v400, 0
      %v413 = vsel %vm310, %v401, 0
      %v416 = vsel %vm310, %v402, 0
      %v419 = vsel %vm310, %v403, 0
      %421 = vmatpush.msra.mxu0 0.0
      %422 = vmatpush.msra.mxu0 0.0
      %423 = vmatpush.msra.mxu0 0.0
      %424 = vmatpush.msra.mxu0 0.0
      %425 = vmatpush.msra.mxu0 0.0
      %426 = vmatpush.msra.mxu0 0.0
      %427 = vmatpush.msra.mxu0 0.0
      %428 = vmatpush.msra.mxu0 0.0
      %429 = vmatpush.msra.mxu0 0.0
      %430 = vmatpush.msra.mxu0 0.0
      %431 = vmatpush.msra.mxu0 0.0
      %432 = vmatpush.msra.mxu0 0.0
      %433 = vmatpush.msra.mxu0 0.0
      %434 = vmatpush.msra.mxu0 0.0
      %435 = vmatpush.msra.mxu0 0.0
      %436 = vmatpush.msra.mxu0 %v404
      %437 = vmatmul.f32.gmra.mxu0 %v410
      %v438 = vpop.f32.mrf.mxu0
      %v439 = vadd.f32 %v407, %v438
      %440 = vmatmul.f32.gmra.mxu0 %v413
      %v441 = vpop.f32.mrf.mxu0
      %v442 = vadd.f32 %v407, %v441
      %443 = vmatmul.f32.gmra.mxu0 %v416
      %v444 = vpop.f32.mrf.mxu0
      %v445 = vadd.f32 %v407, %v444
      %446 = vmatmul.f32.gmra.mxu0 %v419
      %v447 = vpop.f32.mrf.mxu0
      %v448 = vadd.f32 %v407, %v447
      %449 = vdwg.mxu0
      %454 = vrot.lane.b32.xlu0 %v439, 96
      %v455 = vpop.permute.xlu0 %454
      %456 = vrot.lane.b32.xlu0 %v442, 96
      %v457 = vpop.permute.xlu0 %456
      %458 = vrot.lane.b32.xlu0 %v445, 96
      %v459 = vpop.permute.xlu0 %458
      %460 = vrot.lane.b32.xlu0 %v448, 96
      %v461 = vpop.permute.xlu0 %460
      %466 = vxpose.xlu0.b32.start [1/16] %v455, 128
      %467 = vxpose.xlu0.b32.cont [2/16] %v457, 128
      %468 = vxpose.xlu0.b32.cont [3/16] %v459, 128
      %469 = vxpose.xlu0.b32.cont [4/16] %v461, 128
      %470 = vxpose.xlu0.b32.cont [5/16] 0.0, 128
      %471 = vxpose.xlu0.b32.cont [6/16] 0.0, 128
      %472 = vxpose.xlu0.b32.cont [7/16] 0.0, 128
      %473 = vxpose.xlu0.b32.cont [8/16] 0.0, 128
      %474 = vxpose.xlu0.b32.cont [9/16] 0.0, 128
      %475 = vxpose.xlu0.b32.cont [10/16] 0.0, 128
      %476 = vxpose.xlu0.b32.cont [11/16] 0.0, 128
      %477 = vxpose.xlu0.b32.cont [12/16] 0.0, 128
      %478 = vxpose.xlu0.b32.cont [13/16] 0.0, 128
      %479 = vxpose.xlu0.b32.cont [14/16] 0.0, 128
      %480 = vxpose.xlu0.b32.cont [15/16] 0.0, 128
      %481 = vxpose.xlu0.b32.end [16/16] 0.0, 128
      %v482 = vpop.trf.xlu0
      %v483 = vpop.trf.xlu0
      %v484 = vpop.trf.xlu0
      %v485 = vpop.trf.xlu0
      %v486 = vpop.trf.xlu0
      %v487 = vpop.trf.xlu0
      %v488 = vpop.trf.xlu0
      %v489 = vpop.trf.xlu0
      %v490 = vpop.trf.xlu0
      %v491 = vpop.trf.xlu0
      %v492 = vpop.trf.xlu0
      %v493 = vpop.trf.xlu0
      %v494 = vpop.trf.xlu0
      %v495 = vpop.trf.xlu0
      %v496 = vpop.trf.xlu0
      %v497 = vpop.trf.xlu0
      %vm498 = vcmask 261120
      %v500 = vsel %vm498, %v482, 0
      %v503 = vsel %vm498, %v483, 0
      %v506 = vsel %vm498, %v484, 0
      %v509 = vsel %vm498, %v485, 0
      %511 = vmatpush.msra.mxu0 0.0
      %512 = vmatpush.msra.mxu0 0.0
      %513 = vmatpush.msra.mxu0 0.0
      %514 = vmatpush.msra.mxu0 0.0
      %515 = vmatpush.msra.mxu0 0.0
      %516 = vmatpush.msra.mxu0 0.0
      %517 = vmatpush.msra.mxu0 0.0
      %518 = vmatpush.msra.mxu0 0.0
      %519 = vmatpush.msra.mxu0 0.0
      %520 = vmatpush.msra.mxu0 0.0
      %521 = vmatpush.msra.mxu0 0.0
      %522 = vmatpush.msra.mxu0 0.0
      %523 = vmatpush.msra.mxu0 %v403
      %524 = vmatpush.msra.mxu0 %v402
      %525 = vmatpush.msra.mxu0 %v401
      %526 = vmatpush.msra.mxu0 %v400
      %527 = vmatmul.f32.gmra.mxu0 %v500
      %v528 = vpop.f32.mrf.mxu0
      %v529 = vadd.f32 0.0, %v528
      %530 = vmatmul.f32.gmra.mxu0 %v503
      %v531 = vpop.f32.mrf.mxu0
      %v532 = vadd.f32 0.0, %v531
      %533 = vmatmul.f32.gmra.mxu0 %v506
      %v534 = vpop.f32.mrf.mxu0
      %v535 = vadd.f32 0.0, %v534
      %536 = vmatmul.f32.gmra.mxu0 %v509
      %v537 = vpop.f32.mrf.mxu0
      %v538 = vadd.f32 0.0, %v537
      %539 = vdwg.mxu0
      %v540 = vsel %vm498, %v439, 0
      %v542 = vsel %vm498, %v442, 0
      %v544 = vsel %vm498, %v445, 0
      %v546 = vsel %vm498, %v448, 0
      %548 = vmatpush.msra.mxu0 0.0
      %549 = vmatpush.msra.mxu0 0.0
      %550 = vmatpush.msra.mxu0 0.0
      %551 = vmatpush.msra.mxu0 0.0
      %552 = vmatpush.msra.mxu0 0.0
      %553 = vmatpush.msra.mxu0 0.0
      %554 = vmatpush.msra.mxu0 0.0
      %555 = vmatpush.msra.mxu0 0.0
      %556 = vmatpush.msra.mxu0 0.0
      %557 = vmatpush.msra.mxu0 0.0
      %558 = vmatpush.msra.mxu0 0.0
      %559 = vmatpush.msra.mxu0 0.0
      %560 = vmatpush.msra.mxu0 %v538
      %561 = vmatpush.msra.mxu0 %v535
      %562 = vmatpush.msra.mxu0 %v532
      %563 = vmatpush.msra.mxu0 %v529
      %564 = vmatmul.f32.gmra.mxu0 %v540
      %v565 = vpop.f32.mrf.mxu0
      %v566 = vadd.f32 0.0, %v565
      %567 = vmatmul.f32.gmra.mxu0 %v542
      %v568 = vpop.f32.mrf.mxu0
      %v569 = vadd.f32 0.0, %v568
      %570 = vmatmul.f32.gmra.mxu0 %v544
      %v571 = vpop.f32.mrf.mxu0
      %v572 = vadd.f32 0.0, %v571
      %573 = vmatmul.f32.gmra.mxu0 %v546
      %v574 = vpop.f32.mrf.mxu0
      %v575 = vadd.f32 0.0, %v574
      %576 = vdwg.mxu0
      %v577 = vmul.f32 %v566, 0.02777778
      %v578 = vmul.f32 %v569, 0.02777778
      %v579 = vmul.f32 %v572, 0.02777778
      %v580 = vmul.f32 %v575, 0.02777778
      %v581 = vsel %vm310, %v577, 0.0
      %582 = vadd.xlane.f32.xlu0 %v581
      %v583 = vpop.xlane.xlu0 %582
      %v584 = vsel %vm310, %v578, 0.0
      %585 = vadd.xlane.f32.xlu0 %v584
      %v586 = vpop.xlane.xlu0 %585
      %v587 = vsel %vm310, %v579, 0.0
      %588 = vadd.xlane.f32.xlu0 %v587
      %v589 = vpop.xlane.xlu0 %588
      %v590 = vsel %vm310, %v580, 0.0
      %591 = vadd.xlane.f32.xlu0 %v590
      %v592 = vpop.xlane.xlu0 %591
      %v593 = vrcp.pop 8.0
      %v594 = vmul.f32 8.0, %v593
      %v595 = vsub.f32 1.0, %v594
      %v596 = vmul.f32 %v593, %v595
      %v597 = vadd.f32 %v593, %v596
      %vm598 = vweird.f32 %v593
      %v599 = vsel %vm598, %v593, %v597
      %v600 = vmul.f32 %v583, %v599
      %v601 = vmul.f32 %v586, %v599
      %v602 = vmul.f32 %v589, %v599
      %v603 = vmul.f32 %v592, %v599
      %v604 = vsub.f32 %v577, %v600
      %v605 = vsub.f32 %v578, %v601
      %v606 = vsub.f32 %v579, %v602
      %v607 = vsub.f32 %v580, %v603
      %v608 = vmul.f32 %v604, %v604
      %v609 = vmul.f32 %v605, %v605
      %v610 = vmul.f32 %v606, %v606
      %v611 = vmul.f32 %v607, %v607
      %v612 = vsel %vm310, %v608, 0.0
      %613 = vadd.xlane.f32.xlu0 %v612
      %v614 = vpop.xlane.xlu0 %613
      %v615 = vsel %vm310, %v609, 0.0
      %616 = vadd.xlane.f32.xlu0 %v615
      %v617 = vpop.xlane.xlu0 %616
      %v618 = vsel %vm310, %v610, 0.0
      %619 = vadd.xlane.f32.xlu0 %v618
      %v620 = vpop.xlane.xlu0 %619
      %v621 = vsel %vm310, %v611, 0.0
      %622 = vadd.xlane.f32.xlu0 %v621
      %v623 = vpop.xlane.xlu0 %622
      %v624 = vmul.f32 %v614, %v599
      %v625 = vmul.f32 %v617, %v599
      %v626 = vmul.f32 %v620, %v599
      %v627 = vmul.f32 %v623, %v599
      %v628 = vadd.f32 %v624, 1e-05
      %v629 = vadd.f32 %v625, 1e-05
      %v630 = vadd.f32 %v626, 1e-05
      %v631 = vadd.f32 %v627, 1e-05
      %v632 = vrsqrt.pop %v628
      %v633 = vmul.f32 %v632, %v628
      %v634 = vmul.f32 %v633, %v632
      %v635 = vmul.f32 0.5, %v634
      %v636 = vsub.f32 1.5, %v635
      %v637 = vmul.f32 %v632, %v636
      %vm638 = vweird.f32 %v628
      %vm639 = vweird.f32 %v632
      %vm640 = vmor %vm638, %vm639
      %v641 = vsel %vm640, %v632, %v637
      %v642 = vrsqrt.pop %v629
      %v643 = vmul.f32 %v642, %v629
      %v644 = vmul.f32 %v643, %v642
      %v645 = vmul.f32 0.5, %v644
      %v646 = vsub.f32 1.5, %v645
      %v647 = vmul.f32 %v642, %v646
      %vm648 = vweird.f32 %v629
      %vm649 = vweird.f32 %v642
      %vm650 = vmor %vm648, %vm649
      %v651 = vsel %vm650, %v642, %v647
      %v652 = vrsqrt.pop %v630
      %v653 = vmul.f32 %v652, %v630
      %v654 = vmul.f32 %v653, %v652
      %v655 = vmul.f32 0.5, %v654
      %v656 = vsub.f32 1.5, %v655
      %v657 = vmul.f32 %v652, %v656
      %vm658 = vweird.f32 %v630
      %vm659 = vweird.f32 %v652
      %vm660 = vmor %vm658, %vm659
      %v661 = vsel %vm660, %v652, %v657
      %v662 = vrsqrt.pop %v631
      %v663 = vmul.f32 %v662, %v631
      %v664 = vmul.f32 %v663, %v662
      %v665 = vmul.f32 0.5, %v664
      %v666 = vsub.f32 1.5, %v665
      %v667 = vmul.f32 %v662, %v666
      %vm668 = vweird.f32 %v631
      %vm669 = vweird.f32 %v662
      %vm670 = vmor %vm668, %vm669
      %v671 = vsel %vm670, %v662, %v667
      %v672 = vmul.f32 %v604, %v641
      %v673 = vmul.f32 %v605, %v651
      %v674 = vmul.f32 %v606, %v661
      %v675 = vmul.f32 %v607, %v671
      %v676 = vld [vmem:[%s5] sm:$0x1]
      %v678 = vperm.slane %v676, 0
      %v680 = vmul.f32 %v672, %v678
      %v681 = vmul.f32 %v673, %v678
      %v682 = vmul.f32 %v674, %v678
      %v683 = vmul.f32 %v675, %v678
      %v684 = vld [vmem:[%s6] sm:$0x1]
      %v686 = vperm.slane %v684, 0
      %v688 = vadd.f32 %v680, %v686
      %v689 = vadd.f32 %v681, %v686
      %v690 = vadd.f32 %v682, %v686
      %v691 = vadd.f32 %v683, %v686
      %v692 = vadd.f32 %v688, %v400
      %v693 = vadd.f32 %v689, %v401
      %v694 = vadd.f32 %v690, %v402
      %v695 = vadd.f32 %v691, %v403
      %s696 = scalar_lea.vmem %s1, 8
      %v697 = vld [vmem:[%s696] sm:$0xff]
      %s698 = scalar_lea.vmem %s2, 1
      %v699 = vld [vmem:[%s698] sm:$0x1]
      %v701 = vperm.slane %v699, 0
      %v704 = vsel %vm310, %v692, 0
      %v707 = vsel %vm310, %v693, 0
      %v710 = vsel %vm310, %v694, 0
      %v713 = vsel %vm310, %v695, 0
      %715 = vmatpush.msra.mxu0 0.0
      %716 = vmatpush.msra.mxu0 0.0
      %717 = vmatpush.msra.mxu0 0.0
      %718 = vmatpush.msra.mxu0 0.0
      %719 = vmatpush.msra.mxu0 0.0
      %720 = vmatpush.msra.mxu0 0.0
      %721 = vmatpush.msra.mxu0 0.0
      %722 = vmatpush.msra.mxu0 0.0
      %723 = vmatpush.msra.mxu0 0.0
      %724 = vmatpush.msra.mxu0 0.0
      %725 = vmatpush.msra.mxu0 0.0
      %726 = vmatpush.msra.mxu0 0.0
      %727 = vmatpush.msra.mxu0 0.0
      %728 = vmatpush.msra.mxu0 0.0
      %729 = vmatpush.msra.mxu0 0.0
      %730 = vmatpush.msra.mxu0 %v697
      %731 = vmatmul.f32.gmra.mxu0 %v704
      %v732 = vpop.f32.mrf.mxu0
      %v733 = vadd.f32 %v701, %v732
      %734 = vmatmul.f32.gmra.mxu0 %v707
      %v735 = vpop.f32.mrf.mxu0
      %v736 = vadd.f32 %v701, %v735
      %737 = vmatmul.f32.gmra.mxu0 %v710
      %v738 = vpop.f32.mrf.mxu0
      %v739 = vadd.f32 %v701, %v738
      %740 = vmatmul.f32.gmra.mxu0 %v713
      %v741 = vpop.f32.mrf.mxu0
      %v742 = vadd.f32 %v701, %v741
      %743 = vdwg.mxu0
      %748 = vrot.lane.b32.xlu0 %v733, 96
      %v749 = vpop.permute.xlu0 %748
      %750 = vrot.lane.b32.xlu0 %v736, 96
      %v751 = vpop.permute.xlu0 %750
      %752 = vrot.lane.b32.xlu0 %v739, 96
      %v753 = vpop.permute.xlu0 %752
      %754 = vrot.lane.b32.xlu0 %v742, 96
      %v755 = vpop.permute.xlu0 %754
      %760 = vxpose.xlu0.b32.start [1/16] %v749, 128
      %761 = vxpose.xlu0.b32.cont [2/16] %v751, 128
      %762 = vxpose.xlu0.b32.cont [3/16] %v753, 128
      %763 = vxpose.xlu0.b32.cont [4/16] %v755, 128
      %764 = vxpose.xlu0.b32.cont [5/16] 0.0, 128
      %765 = vxpose.xlu0.b32.cont [6/16] 0.0, 128
      %766 = vxpose.xlu0.b32.cont [7/16] 0.0, 128
      %767 = vxpose.xlu0.b32.cont [8/16] 0.0, 128
      %768 = vxpose.xlu0.b32.cont [9/16] 0.0, 128
      %769 = vxpose.xlu0.b32.cont [10/16] 0.0, 128
      %770 = vxpose.xlu0.b32.cont [11/16] 0.0, 128
      %771 = vxpose.xlu0.b32.cont [12/16] 0.0, 128
      %772 = vxpose.xlu0.b32.cont [13/16] 0.0, 128
      %773 = vxpose.xlu0.b32.cont [14/16] 0.0, 128
      %774 = vxpose.xlu0.b32.cont [15/16] 0.0, 128
      %775 = vxpose.xlu0.b32.end [16/16] 0.0, 128
      %v776 = vpop.trf.xlu0
      %v777 = vpop.trf.xlu0
      %v778 = vpop.trf.xlu0
      %v779 = vpop.trf.xlu0
      %v780 = vpop.trf.xlu0
      %v781 = vpop.trf.xlu0
      %v782 = vpop.trf.xlu0
      %v783 = vpop.trf.xlu0
      %v784 = vpop.trf.xlu0
      %v785 = vpop.trf.xlu0
      %v786 = vpop.trf.xlu0
      %v787 = vpop.trf.xlu0
      %v788 = vpop.trf.xlu0
      %v789 = vpop.trf.xlu0
      %v790 = vpop.trf.xlu0
      %v791 = vpop.trf.xlu0
      %v793 = vsel %vm498, %v776, 0
      %v796 = vsel %vm498, %v777, 0
      %v799 = vsel %vm498, %v778, 0
      %v802 = vsel %vm498, %v779, 0
      %804 = vmatpush.msra.mxu0 0.0
      %805 = vmatpush.msra.mxu0 0.0
      %806 = vmatpush.msra.mxu0 0.0
      %807 = vmatpush.msra.mxu0 0.0
      %808 = vmatpush.msra.mxu0 0.0
      %809 = vmatpush.msra.mxu0 0.0
      %810 = vmatpush.msra.mxu0 0.0
      %811 = vmatpush.msra.mxu0 0.0
      %812 = vmatpush.msra.mxu0 0.0
      %813 = vmatpush.msra.mxu0 0.0
      %814 = vmatpush.msra.mxu0 0.0
      %815 = vmatpush.msra.mxu0 0.0
      %816 = vmatpush.msra.mxu0 %v695
      %817 = vmatpush.msra.mxu0 %v694
      %818 = vmatpush.msra.mxu0 %v693
      %819 = vmatpush.msra.mxu0 %v692
      %820 = vmatmul.f32.gmra.mxu0 %v793
      %v821 = vpop.f32.mrf.mxu0
      %v822 = vadd.f32 0.0, %v821
      %823 = vmatmul.f32.gmra.mxu0 %v796
      %v824 = vpop.f32.mrf.mxu0
      %v825 = vadd.f32 0.0, %v824
      %826 = vmatmul.f32.gmra.mxu0 %v799
      %v827 = vpop.f32.mrf.mxu0
      %v828 = vadd.f32 0.0, %v827
      %829 = vmatmul.f32.gmra.mxu0 %v802
      %v830 = vpop.f32.mrf.mxu0
      %v831 = vadd.f32 0.0, %v830
      %832 = vdwg.mxu0
      %v833 = vsel %vm498, %v733, 0
      %v835 = vsel %vm498, %v736, 0
      %v837 = vsel %vm498, %v739, 0
      %v839 = vsel %vm498, %v742, 0
      %841 = vmatpush.msra.mxu0 0.0
      %842 = vmatpush.msra.mxu0 0.0
      %843 = vmatpush.msra.mxu0 0.0
      %844 = vmatpush.msra.mxu0 0.0
      %845 = vmatpush.msra.mxu0 0.0
      %846 = vmatpush.msra.mxu0 0.0
      %847 = vmatpush.msra.mxu0 0.0
      %848 = vmatpush.msra.mxu0 0.0
      %849 = vmatpush.msra.mxu0 0.0
      %850 = vmatpush.msra.mxu0 0.0
      %851 = vmatpush.msra.mxu0 0.0
      %852 = vmatpush.msra.mxu0 0.0
      %853 = vmatpush.msra.mxu0 %v831
      %854 = vmatpush.msra.mxu0 %v828
      %855 = vmatpush.msra.mxu0 %v825
      %856 = vmatpush.msra.mxu0 %v822
      %857 = vmatmul.f32.gmra.mxu0 %v833
      %v858 = vpop.f32.mrf.mxu0
      %v859 = vadd.f32 0.0, %v858
      %860 = vmatmul.f32.gmra.mxu0 %v835
      %v861 = vpop.f32.mrf.mxu0
      %v862 = vadd.f32 0.0, %v861
      %863 = vmatmul.f32.gmra.mxu0 %v837
      %v864 = vpop.f32.mrf.mxu0
      %v865 = vadd.f32 0.0, %v864
      %866 = vmatmul.f32.gmra.mxu0 %v839
      %v867 = vpop.f32.mrf.mxu0
      %v868 = vadd.f32 0.0, %v867
      %869 = vdwg.mxu0
      %v870 = vmul.f32 %v859, 0.02777778
      %v871 = vmul.f32 %v862, 0.02777778
      %v872 = vmul.f32 %v865, 0.02777778
      %v873 = vmul.f32 %v868, 0.02777778
      %v874 = vsel %vm310, %v870, 0.0
      %875 = vadd.xlane.f32.xlu0 %v874
      %v876 = vpop.xlane.xlu0 %875
      %v877 = vsel %vm310, %v871, 0.0
      %878 = vadd.xlane.f32.xlu0 %v877
      %v879 = vpop.xlane.xlu0 %878
      %v880 = vsel %vm310, %v872, 0.0
      %881 = vadd.xlane.f32.xlu0 %v880
      %v882 = vpop.xlane.xlu0 %881
      %v883 = vsel %vm310, %v873, 0.0
      %884 = vadd.xlane.f32.xlu0 %v883
      %v885 = vpop.xlane.xlu0 %884
      %v886 = vmul.f32 %v876, %v599
      %v887 = vmul.f32 %v879, %v599
      %v888 = vmul.f32 %v882, %v599
      %v889 = vmul.f32 %v885, %v599
      %v890 = vsub.f32 %v870, %v886
      %v891 = vsub.f32 %v871, %v887
      %v892 = vsub.f32 %v872, %v888
      %v893 = vsub.f32 %v873, %v889
      %v894 = vmul.f32 %v890, %v890
      %v895 = vmul.f32 %v891, %v891
      %v896 = vmul.f32 %v892, %v892
      %v897 = vmul.f32 %v893, %v893
      %v898 = vsel %vm310, %v894, 0.0
      %899 = vadd.xlane.f32.xlu0 %v898
      %v900 = vpop.xlane.xlu0 %899
      %v901 = vsel %vm310, %v895, 0.0
      %902 = vadd.xlane.f32.xlu0 %v901
      %v903 = vpop.xlane.xlu0 %902
      %v904 = vsel %vm310, %v896, 0.0
      %905 = vadd.xlane.f32.xlu0 %v904
      %v906 = vpop.xlane.xlu0 %905
      %v907 = vsel %vm310, %v897, 0.0
      %908 = vadd.xlane.f32.xlu0 %v907
      %v909 = vpop.xlane.xlu0 %908
      %v910 = vmul.f32 %v900, %v599
      %v911 = vmul.f32 %v903, %v599
      %v912 = vmul.f32 %v906, %v599
      %v913 = vmul.f32 %v909, %v599
      %v914 = vadd.f32 %v910, 1e-05
      %v915 = vadd.f32 %v911, 1e-05
      %v916 = vadd.f32 %v912, 1e-05
      %v917 = vadd.f32 %v913, 1e-05
      %v918 = vrsqrt.pop %v914
      %v919 = vmul.f32 %v918, %v914
      %v920 = vmul.f32 %v919, %v918
      %v921 = vmul.f32 0.5, %v920
      %v922 = vsub.f32 1.5, %v921
      %v923 = vmul.f32 %v918, %v922
      %vm924 = vweird.f32 %v914
      %vm925 = vweird.f32 %v918
      %vm926 = vmor %vm924, %vm925
      %v927 = vsel %vm926, %v918, %v923
      %v928 = vrsqrt.pop %v915
      %v929 = vmul.f32 %v928, %v915
      %v930 = vmul.f32 %v929, %v928
      %v931 = vmul.f32 0.5, %v930
      %v932 = vsub.f32 1.5, %v931
      %v933 = vmul.f32 %v928, %v932
      %vm934 = vweird.f32 %v915
      %vm935 = vweird.f32 %v928
      %vm936 = vmor %vm934, %vm935
      %v937 = vsel %vm936, %v928, %v933
      %v938 = vrsqrt.pop %v916
      %v939 = vmul.f32 %v938, %v916
      %v940 = vmul.f32 %v939, %v938
      %v941 = vmul.f32 0.5, %v940
      %v942 = vsub.f32 1.5, %v941
      %v943 = vmul.f32 %v938, %v942
      %vm944 = vweird.f32 %v916
      %vm945 = vweird.f32 %v938
      %vm946 = vmor %vm944, %vm945
      %v947 = vsel %vm946, %v938, %v943
      %v948 = vrsqrt.pop %v917
      %v949 = vmul.f32 %v948, %v917
      %v950 = vmul.f32 %v949, %v948
      %v951 = vmul.f32 0.5, %v950
      %v952 = vsub.f32 1.5, %v951
      %v953 = vmul.f32 %v948, %v952
      %vm954 = vweird.f32 %v917
      %vm955 = vweird.f32 %v948
      %vm956 = vmor %vm954, %vm955
      %v957 = vsel %vm956, %v948, %v953
      %v958 = vmul.f32 %v890, %v927
      %v959 = vmul.f32 %v891, %v937
      %v960 = vmul.f32 %v892, %v947
      %v961 = vmul.f32 %v893, %v957
      %s962 = scalar_lea.vmem %s5, 1
      %v963 = vld [vmem:[%s962] sm:$0x1]
      %v965 = vperm.slane %v963, 0
      %v967 = vmul.f32 %v958, %v965
      %v968 = vmul.f32 %v959, %v965
      %v969 = vmul.f32 %v960, %v965
      %v970 = vmul.f32 %v961, %v965
      %s971 = scalar_lea.vmem %s6, 1
      %v972 = vld [vmem:[%s971] sm:$0x1]
      %v974 = vperm.slane %v972, 0
      %v976 = vadd.f32 %v967, %v974
      %v977 = vadd.f32 %v968, %v974
      %v978 = vadd.f32 %v969, %v974
      %v979 = vadd.f32 %v970, %v974
      %v980 = vadd.f32 %v976, %v692
      %v981 = vadd.f32 %v977, %v693
      %v982 = vadd.f32 %v978, %v694
      %v983 = vadd.f32 %v979, %v695
      %v984 = vld [vmem:[%s7] sm:$0xff]
      %v985 = vld [vmem:[%s7 + $0x8] sm:$0xff]
      %v987 = vsel %vm498, %v984, 0
      %v990 = vsel %vm498, %v985, 0
      %992 = vmatpush.msra.mxu0 0.0
      %993 = vmatpush.msra.mxu0 0.0
      %994 = vmatpush.msra.mxu0 0.0
      %995 = vmatpush.msra.mxu0 0.0
      %996 = vmatpush.msra.mxu0 0.0
      %997 = vmatpush.msra.mxu0 0.0
      %998 = vmatpush.msra.mxu0 0.0
      %999 = vmatpush.msra.mxu0 0.0
      %1000 = vmatpush.msra.mxu0 0.0
      %1001 = vmatpush.msra.mxu0 0.0
      %1002 = vmatpush.msra.mxu0 0.0
      %1003 = vmatpush.msra.mxu0 0.0
      %1004 = vmatpush.msra.mxu0 %v983
      %1005 = vmatpush.msra.mxu0 %v982
      %1006 = vmatpush.msra.mxu0 %v981
      %1007 = vmatpush.msra.mxu0 %v980
      %1008 = vmatmul.f32.gmra.mxu0 %v987
      %v1009 = vpop.f32.mrf.mxu0
      %v1010 = vadd.f32 0.0, %v1009
      %1011 = vmatmul.f32.gmra.mxu0 %v990
      %v1012 = vpop.f32.mrf.mxu0
      %v1013 = vadd.f32 0.0, %v1012
      %1014 = vdwg.mxu0
      %v1015 = vsel %vm498, %v984, 0.0
      %1016 = vadd.xlane.f32.xlu0 %v1015
      %v1017 = vpop.xlane.xlu0 %1016
      %v1018 = vsel %vm498, %v985, 0.0
      %1019 = vadd.xlane.f32.xlu0 %v1018
      %v1020 = vpop.xlane.xlu0 %1019
      %s1021 = scalar_lea.vmem %s1, 16
      %v1022 = vld [vmem:[%s1021] sm:$0xff]
      %s1023 = scalar_lea.vmem %s2, 2
      %v1024 = vld [vmem:[%s1023] sm:$0x1]
      %v1026 = vperm.slane %v1024, 0
      %1028 = vrot.lane.b32.xlu0 %v1022, 96
      %v1029 = vpop.permute.xlu0 %1028
      %1031 = vrot.lane.b32.xlu0 %v1026, 96
      %v1032 = vpop.permute.xlu0 %1031
      %v1035 = vsel %vm310, %v980, 0
      %v1038 = vsel %vm310, %v981, 0
      %1040 = vmatpush.msra.mxu0 0.0
      %1041 = vmatpush.msra.mxu0 0.0
      %1042 = vmatpush.msra.mxu0 0.0
      %1043 = vmatpush.msra.mxu0 0.0
      %1044 = vmatpush.msra.mxu0 0.0
      %1045 = vmatpush.msra.mxu0 0.0
      %1046 = vmatpush.msra.mxu0 0.0
      %1047 = vmatpush.msra.mxu0 0.0
      %1048 = vmatpush.msra.mxu0 0.0
      %1049 = vmatpush.msra.mxu0 0.0
      %1050 = vmatpush.msra.mxu0 0.0
      %1051 = vmatpush.msra.mxu0 0.0
      %1052 = vmatpush.msra.mxu0 0.0
      %1053 = vmatpush.msra.mxu0 0.0
      %1054 = vmatpush.msra.mxu0 0.0
      %1055 = vmatpush.msra.mxu0 %v1029
      %1056 = vmatmul.f32.gmra.mxu0 %v1035
      %v1057 = vpop.f32.mrf.mxu0
      %v1058 = vadd.f32 %v1032, %v1057
      %1059 = vmatmul.f32.gmra.mxu0 %v1038
      %v1060 = vpop.f32.mrf.mxu0
      %v1061 = vadd.f32 %v1032, %v1060
      %1062 = vdwg.mxu0
      %1063 = vxpose.xlu0.b32.start [1/16] %v1058, 128
      %1064 = vxpose.xlu0.b32.cont [2/16] %v1061, 128
      %1065 = vxpose.xlu0.b32.cont [3/16] 0.0, 128
      %1066 = vxpose.xlu0.b32.cont [4/16] 0.0, 128
      %1067 = vxpose.xlu0.b32.cont [5/16] 0.0, 128
      %1068 = vxpose.xlu0.b32.cont [6/16] 0.0, 128
      %1069 = vxpose.xlu0.b32.cont [7/16] 0.0, 128
      %1070 = vxpose.xlu0.b32.cont [8/16] 0.0, 128
      %1071 = vxpose.xlu0.b32.cont [9/16] 0.0, 128
      %1072 = vxpose.xlu0.b32.cont [10/16] 0.0, 128
      %1073 = vxpose.xlu0.b32.cont [11/16] 0.0, 128
      %1074 = vxpose.xlu0.b32.cont [12/16] 0.0, 128
      %1075 = vxpose.xlu0.b32.cont [13/16] 0.0, 128
      %1076 = vxpose.xlu0.b32.cont [14/16] 0.0, 128
      %1077 = vxpose.xlu0.b32.cont [15/16] 0.0, 128
      %1078 = vxpose.xlu0.b32.end [16/16] 0.0, 128
      %v1079 = vpop.trf.xlu0
      %v1080 = vpop.trf.xlu0
      %v1081 = vpop.trf.xlu0
      %v1082 = vpop.trf.xlu0
      %v1083 = vpop.trf.xlu0
      %v1084 = vpop.trf.xlu0
      %v1085 = vpop.trf.xlu0
      %v1086 = vpop.trf.xlu0
      %v1087 = vpop.trf.xlu0
      %v1088 = vpop.trf.xlu0
      %v1089 = vpop.trf.xlu0
      %v1090 = vpop.trf.xlu0
      %v1091 = vpop.trf.xlu0
      %v1092 = vpop.trf.xlu0
      %v1093 = vpop.trf.xlu0
      %v1094 = vpop.trf.xlu0
      %vm1095 = vcmask 130048
      %v1097 = vsel %vm1095, %v1079, 0
      %v1100 = vsel %vm1095, %v1080, 0
      %v1103 = vsel %vm1095, %v1081, 0
      %v1106 = vsel %vm1095, %v1082, 0
      %1108 = vmatpush.msra.mxu0 0.0
      %1109 = vmatpush.msra.mxu0 0.0
      %1110 = vmatpush.msra.mxu0 0.0
      %1111 = vmatpush.msra.mxu0 0.0
      %1112 = vmatpush.msra.mxu0 0.0
      %1113 = vmatpush.msra.mxu0 0.0
      %1114 = vmatpush.msra.mxu0 0.0
      %1115 = vmatpush.msra.mxu0 0.0
      %1116 = vmatpush.msra.mxu0 0.0
      %1117 = vmatpush.msra.mxu0 0.0
      %1118 = vmatpush.msra.mxu0 0.0
      %1119 = vmatpush.msra.mxu0 0.0
      %1120 = vmatpush.msra.mxu0 0.0
      %1121 = vmatpush.msra.mxu0 0.0
      %1122 = vmatpush.msra.mxu0 %v307
      %1123 = vmatpush.msra.mxu0 %v306
      %1124 = vmatmul.f32.gmra.mxu0 %v1097
      %v1125 = vpop.f32.mrf.mxu0
      %v1126 = vadd.f32 0.0, %v1125
      %1127 = vmatmul.f32.gmra.mxu0 %v1100
      %v1128 = vpop.f32.mrf.mxu0
      %v1129 = vadd.f32 0.0, %v1128
      %1130 = vmatmul.f32.gmra.mxu0 %v1103
      %v1131 = vpop.f32.mrf.mxu0
      %v1132 = vadd.f32 0.0, %v1131
      %1133 = vmatmul.f32.gmra.mxu0 %v1106
      %v1134 = vpop.f32.mrf.mxu0
      %v1135 = vadd.f32 0.0, %v1134
      %1136 = vdwg.mxu0
      %v1138 = vmul.f32 %v1017, %v1026
      %v1139 = vmul.f32 %v1020, %v1026
      %v1141 = vsel %vm310, %v1010, 0
      %v1144 = vsel %vm310, %v1013, 0
      %1146 = vmatpush.msra.mxu0 0.0
      %1147 = vmatpush.msra.mxu0 0.0
      %1148 = vmatpush.msra.mxu0 0.0
      %1149 = vmatpush.msra.mxu0 0.0
      %1150 = vmatpush.msra.mxu0 0.0
      %1151 = vmatpush.msra.mxu0 0.0
      %1152 = vmatpush.msra.mxu0 0.0
      %1153 = vmatpush.msra.mxu0 0.0
      %1154 = vmatpush.msra.mxu0 0.0
      %1155 = vmatpush.msra.mxu0 0.0
      %1156 = vmatpush.msra.mxu0 0.0
      %1157 = vmatpush.msra.mxu0 0.0
      %1158 = vmatpush.msra.mxu0 0.0
      %1159 = vmatpush.msra.mxu0 0.0
      %1160 = vmatpush.msra.mxu0 0.0
      %1161 = vmatpush.msra.mxu0 %v1022
      %1162 = vmatmul.f32.gmra.mxu0 %v1141
      %v1163 = vpop.f32.mrf.mxu0
      %v1164 = vadd.f32 %v1138, %v1163
      %1165 = vmatmul.f32.gmra.mxu0 %v1144
      %v1166 = vpop.f32.mrf.mxu0
      %v1167 = vadd.f32 %v1139, %v1166
      %1168 = vdwg.mxu0
      %v1170 = vsel %vm498, %v1164, 0
      %v1173 = vsel %vm498, %v1167, 0
      %1175 = vmatpush.msra.mxu0 0.0
      %1176 = vmatpush.msra.mxu0 0.0
      %1177 = vmatpush.msra.mxu0 0.0
      %1178 = vmatpush.msra.mxu0 0.0
      %1179 = vmatpush.msra.mxu0 0.0
      %1180 = vmatpush.msra.mxu0 0.0
      %1181 = vmatpush.msra.mxu0 0.0
      %1182 = vmatpush.msra.mxu0 0.0
      %1183 = vmatpush.msra.mxu0 0.0
      %1184 = vmatpush.msra.mxu0 0.0
      %1185 = vmatpush.msra.mxu0 0.0
      %1186 = vmatpush.msra.mxu0 0.0
      %1187 = vmatpush.msra.mxu0 %v1135
      %1188 = vmatpush.msra.mxu0 %v1132
      %1189 = vmatpush.msra.mxu0 %v1129
      %1190 = vmatpush.msra.mxu0 %v1126
      %1191 = vmatmul.f32.gmra.mxu0 %v1170
      %v1192 = vpop.f32.mrf.mxu0
      %v1193 = vadd.f32 0.0, %v1192
      %1194 = vmatmul.f32.gmra.mxu0 %v1173
      %v1195 = vpop.f32.mrf.mxu0
      %v1196 = vadd.f32 0.0, %v1195
      %1197 = vdwg.mxu0
      %v1198 = vmul.f32 %v1193, 0.00308642
      %v1199 = vmul.f32 %v1196, 0.00308642
      %1200 = vst.msk [vmem:[%s305] sm:$0xff] %vm310, %v1198
      %1201 = vst.msk [vmem:[%s305 + $0x8] sm:$0xff] %vm310, %v1199
      %p1202 = scmp.lt.s32.totalorder %s19, 1
      %s1203 = scalar_select %p1202, %s19, 1
      %s1204 = smul.addr %s1203, 2
      %s1205 = smul.addr %s1204, 8
      %s1206 = scalar_lea.vmem %s8, %s1205
      // Predicated region
      $region53: #{_lambda_.3} parent=51 // pred_check
        %p1207 = pneg %p210
      $region54: #{_lambda_.3} parent=51 // pred_check_branch
        %1209 = sbr.rel (%p1207) target = $region56
      $region55: #{_lambda_.3} parent=51 // pred_region
        _
      $region56: #{_lambda_.3} parent=51 // pred_fallthru
        _
    $region52: #{_lambda_.3} parent=5 // pred_fallthru
      _
    %p1210 = scmp.le.s32.totalorder 2, %s14
    // Predicated region
    $region57: #{_lambda_.3} parent=5 // pred_check
      %p1211 = pneg %p1210
    $region58: #{_lambda_.3} parent=5 // pred_check_branch
      %1213 = sbr.rel (%p1211) target = $region60
    $region59: #{_lambda_.3} parent=5 // pred_region
      %s1214 = ssub.s32 %s14, 2
      // Predicated region
      $region61: #{_lambda_.3} parent=59 // pred_check
        %p1215 = pneg %p216
      $region62: #{_lambda_.3} parent=59 // pred_check_branch
        %1217 = sbr.rel (%p1215) target = $region64
      $region63: #{_lambda_.3} parent=59 // pred_region
        %p1218 = scmp.lt.s32.totalorder %s20, 1
        %s1219 = scalar_select %p1218, %s20, 1
        %s1220 = smul.addr %s1219, 2
        %s1221 = smul.addr %s1220, 8
        %s1222 = scalar_lea.vmem %s8, %s1221
      $region64: #{_lambda_.3} parent=59 // pred_fallthru
        _
    $region60: #{_lambda_.3} parent=5 // pred_fallthru
      _
  $region6: #{_lambda_.3} parent=0 // loop_footer
    %s18 = sadd.s32 1, %s14
  $region7: #{_lambda_.3} parent=0 // loop_footer_branch
    %13 = sbr.rel target = $region3
  $region8: #{_lambda_.3} parent=0 // loop_exit
    _

</llo_original>
